<compile_context>
chip_gen: v6e
topology: v6e:2x2x1
jax: 0.10.0
libtpu: 0.0.40
codegen_flags: <defaults>
</compile_context>

<pallas_src>
import math

import jax
import jax.numpy as jnp
import numpy as np
from jax import lax
from jax.experimental import pallas as pl
from jax.experimental.pallas import tpu as pltpu

# ---- small, module-consistent config ----------------------------------------
B = 2            # batch
S = 16           # sequence length (tgt == src, as required by the reference .view)
D_MODEL = 32     # d_model
NUM_HEADS = 4
D_K = D_MODEL // NUM_HEADS
D_FF = 64
WINDOW = 4       # config.window_size
GLOBAL_TOKENS = 0
EPS = 1e-5       # ResidualConnection LayerNorm eps

BS = B * S                 # 32 flattened (batch, seq) rows
HK = NUM_HEADS * BS        # 128 score columns (heads x flattened keys)
SEG = 128                  # lane-aligned slab segment width

_INV_SQRT2 = 0.7071067811865476
_NEG = -1e30

# constant-slab row offsets (cslab is (132, 128))
_R_SELF = 0                       # additive self-attn mask   (BS rows)
_R_CROSS = _R_SELF + BS           # additive cross-attn mask  (BS rows)
_R_REP = _R_CROSS + BS            # replication matrix        (BS rows)
_R_SELT = _R_REP + BS             # head selector (transposed)(D_MODEL rows)
_R_HEAD = _R_SELT + D_MODEL       # head one-hot              (NUM_HEADS rows)
_C_ROWS = _R_HEAD + NUM_HEADS     # 132 total rows


# ---- Pallas kernel -----------------------------------------------------------
def decoder_block_kernel(x_ref, enc_ref, wslab_ref, w2_ref, vslab_ref, cslab_ref,
                         out_ref):
    x = x_ref[...]            # (BS, D) flattened activations
    enc = enc_ref[...]        # (BS, D) flattened encoder output
    ws = wslab_ref[...]       # (D, 6*128) lane-dense weight slab
    w2 = w2_ref[...]          # (D_FF, D)
    vs = vslab_ref[...]       # (13, 128)  bias / LN slab (one segment per row)
    cs = cslab_ref[...]       # (132, 128) host-precomputed masks / selectors

    def wseg(i, n):           # weight segment i (128-lane aligned), first n lanes
        return ws[:, i * SEG:i * SEG + n]

    def vrow(i, n):           # bias / LN row i, first n lanes -> (1, n)
        return vs[i:i + 1, :n]

    wqkv1, wo1 = wseg(0, 3 * D_MODEL), wseg(1, D_MODEL)
    wq2, wkv2, wo2 = wseg(2, D_MODEL), wseg(3, 2 * D_MODEL), wseg(4, D_MODEL)
    w1 = wseg(5, D_FF)

    ln1_g, ln1_b = vrow(0, D_MODEL), vrow(1, D_MODEL)
    bqkv1, bo1 = vrow(2, 3 * D_MODEL), vrow(3, D_MODEL)
    ln2_g, ln2_b = vrow(4, D_MODEL), vrow(5, D_MODEL)
    bq2, bkv2, bo2 = vrow(6, D_MODEL), vrow(7, 2 * D_MODEL), vrow(8, D_MODEL)
    ln3_g, ln3_b = vrow(9, D_MODEL), vrow(10, D_MODEL)
    b1, b2 = vrow(11, D_FF), vrow(12, D_MODEL)

    amask_self = cs[_R_SELF:_R_SELF + BS, :]        # (BS, HK), 0 / -1e30
    amask_cross = cs[_R_CROSS:_R_CROSS + BS, :]     # (BS, HK)
    rep = cs[_R_REP:_R_REP + BS, :]                 # (BS, HK): rep[j, c] = [j == c % BS]
    sel_T = cs[_R_SELT:_R_SELT + D_MODEL, :]        # (D, HK):  [d // d_k == c // BS]
    head_oh = cs[_R_HEAD:_R_HEAD + NUM_HEADS, :]    # (H, HK):  [h == c // BS]

    def mm(a, b):
        return jnp.dot(a, b, preferred_element_type=jnp.float32)

    def layernorm(v, g, b):
        mu = jnp.mean(v, axis=-1, keepdims=True)
        var = jnp.mean((v - mu) ** 2, axis=-1, keepdims=True)
        return (v - mu) * lax.rsqrt(var + EPS) * g + b

    def block_diag_T(M):
        # (BS, D) -> lane-dense (D, H*BS): out[d, h*BS+j] = M[j, d] * [d in head h]
        # (one tiny MXU replication matmul + a 4-vreg mask multiply; no (128,32)
        #  lane-masked tiles).
        return mm(M.T, rep) * sel_T

    def attention(Q, K, V, wo, bo, amask):
        k_bd_T = block_diag_T(K)                       # (D, HK)
        v_bd_T = block_diag_T(V)                       # (D, HK)
        # all heads and both batches in ONE lane-dense MXU op; Q was pre-scaled by
        # 1/sqrt(d_k) at pack time, so no in-kernel scale multiply.
        s = mm(Q, k_bd_T) + amask                      # (BS, HK)
        # numerically safe PER-HEAD max, broadcast into its 32-lane head block
        m_b = None
        for h in range(NUM_HEADS):
            mh = jnp.max(s[:, h * BS:(h + 1) * BS], axis=-1, keepdims=True)  # (BS,1)
            term = mh * head_oh[h:h + 1, :]                                   # (BS,HK)
            m_b = term if m_b is None else m_b + term
        e = jnp.exp(s - m_b)
        # per-head sums via a skinny matmul; reciprocal only on the (BS, H) sums
        d4 = lax.dot_general(e, head_oh, (((1,), (1,)), ((), ())),
                             preferred_element_type=jnp.float32)              # (BS,H)
        p = e * mm(pl.reciprocal(d4, approx=True), head_oh)
        # heads already concat-ordered: o[:, h*d_k+d] only mixes head h
        o = lax.dot_general(p, v_bd_T, (((1,), (1,)), ((), ())),
                            preferred_element_type=jnp.float32)               # (BS,D)
        return mm(o, wo) + bo

    # 1) causal + local-window self-attention, pre-LN residual (fused QKV projection)
    n1 = layernorm(x, ln1_g, ln1_b)
    qkv = mm(n1, wqkv1) + bqkv1
    x = x + attention(qkv[:, :D_MODEL], qkv[:, D_MODEL:2 * D_MODEL],
                      qkv[:, 2 * D_MODEL:], wo1, bo1, amask_self)

    # 2) local-window cross-attention, pre-LN residual (fused KV projection)
    n2 = layernorm(x, ln2_g, ln2_b)
    q2 = mm(n2, wq2) + bq2
    kv2 = mm(enc, wkv2) + bkv2
    x = x + attention(q2, kv2[:, :D_MODEL], kv2[:, D_MODEL:], wo2, bo2, amask_cross)

    # 3) feed-forward (Linear -> exact erf GELU -> Linear), pre-LN residual
    n3 = layernorm(x, ln3_g, ln3_b)
    h = mm(n3, w1) + b1
    h = 0.5 * h * (1.0 + lax.erf(h * _INV_SQRT2))
    x = x + mm(h, w2) + b2

    out_ref[...] = x.astype(out_ref.dtype)


# ---- host-side constant / parameter packing (done ONCE, not per call) ---------
def build_constants():
    q = np.arange(BS)
    c = np.arange(HK)
    kk = c % BS
    b_q, t_q = q // S, q % S
    b_k, t_k = kk // S, kk % S
    same_b = b_q[:, None] == b_k[None, :]
    in_win = same_b & (np.abs(t_k[None, :] - t_q[:, None]) <= WINDOW)
    if GLOBAL_TOKENS > 0:
        in_win |= same_b & ((t_q[:, None] < GLOBAL_TOKENS) | (t_k[None, :] < GLOBAL_TOKENS))
    causal = t_k[None, :] <= t_q[:, None]
    # every query row keeps at least its diagonal key in every head block, so the
    # -1e30 additive mask matches the -inf reference (no fully-masked softmax rows).
    amask_cross = np.where(in_win, 0.0, _NEG).astype(np.float32)
    amask_self = np.where(in_win & causal, 0.0, _NEG).astype(np.float32)
    rep = (np.arange(BS)[:, None] == kk[None, :]).astype(np.float32)                 # (BS,HK)
    sel_T = ((np.arange(D_MODEL)[:, None] // D_K) == (c[None, :] // BS)).astype(np.float32)
    head_oh = (np.arange(NUM_HEADS)[:, None] == (c[None, :] // BS)).astype(np.float32)
    cslab = np.concatenate([amask_self, amask_cross, rep, sel_T, head_oh], axis=0)
    assert cslab.shape == (_C_ROWS, HK)
    return jnp.asarray(cslab)


def pack_params(params):
    (ln1_g, ln1_b, wq1, bq1, wk1, bk1, wv1, bv1, wo1, bo1,
     ln2_g, ln2_b, wq2, bq2, wk2, bk2, wv2, bv2, wo2, bo2,
     ln3_g, ln3_b, w1, b1, w2, b2) = [np.asarray(p, np.float32) for p in params]
    scale = 1.0 / math.sqrt(D_K)   # fold 1/sqrt(d_k) into the query projections

    def seg(a):  # pad each piece to a 128-lane-aligned segment
        return np.pad(a, ((0, 0), (0, SEG - a.shape[-1])))

    w_slab = np.concatenate([
        seg(np.concatenate([wq1 * scale, wk1, wv1], axis=1)),   # fused self-attn QKV
        seg(wo1),
        seg(wq2 * scale),
        seg(np.concatenate([wk2, wv2], axis=1)),                # fused cross-attn KV
        seg(wo2),
        seg(w1),
    ], axis=1)                                                  # (D, 6*128)

    v_rows = [ln1_g, ln1_b,
              np.concatenate([bq1 * scale, bk1, bv1], axis=1), bo1,
              ln2_g, ln2_b, bq2 * scale,
              np.concatenate([bk2, bv2], axis=1), bo2,
              ln3_g, ln3_b, b1, b2]
    v_slab = np.concatenate([seg(r) for r in v_rows], axis=0)   # (13, 128)
    return jnp.asarray(w_slab), jnp.asarray(w2), jnp.asarray(v_slab)


# ---- builder: packs once, returns a jitted per-call closure --------------------
def make_decoder_block(params):
    w_slab, w2, v_slab = pack_params(params)
    c_slab = build_constants()

    call = pl.pallas_call(
        decoder_block_kernel,
        out_shape=jax.ShapeDtypeStruct((BS, D_MODEL), jnp.float32),
        in_specs=[pl.BlockSpec(memory_space=pltpu.MemorySpace.VMEM) for _ in range(6)],
        out_specs=pl.BlockSpec(memory_space=pltpu.MemorySpace.VMEM),
        input_output_aliases={0: 0},     # x buffer reused for the output
    )

    @jax.jit
    def apply(x, enc):
        # (B,S,D) -> (B*S,D): leading-dim merge only, layout-free
        out = call(x.reshape(BS, D_MODEL), enc.reshape(BS, D_MODEL),
                   w_slab, w2, v_slab, c_slab)
        return out.reshape(B, S, D_MODEL)

    return apply


# ---- masks for the pure-JAX reference only ------------------------------------
def build_masks():
    i = np.arange(S)[:, None]
    j = np.arange(S)[None, :]
    local = (j >= i - WINDOW) & (j <= i + WINDOW)
    if GLOBAL_TOKENS > 0:
        local = local | (i < GLOBAL_TOKENS) | (j < GLOBAL_TOKENS)
    self_mask = local & (j <= i)
    cross_mask = local
    return (jnp.asarray(self_mask, jnp.float32),
            jnp.asarray(cross_mask, jnp.float32))


# ---- deterministic parameter init (shapes from the module __init__) -----------
def init_params():
    ks = iter(jax.random.split(jax.random.PRNGKey(42), 64))

    def w(shape, scale=0.02):
        return (scale * jax.random.normal(next(ks), shape)).astype(jnp.float32)

    params = []

    def add_ln():
        params.append(jnp.ones((1, D_MODEL), jnp.float32))      # gamma
        params.append(jnp.zeros((1, D_MODEL), jnp.float32))     # beta

    def add_attn():
        for _ in range(4):  # query, key, value, output projections
            params.append(w((D_MODEL, D_MODEL)))                 # weight (in, out)
            params.append(jnp.zeros((1, D_MODEL), jnp.float32))  # bias (zero-init)

    add_ln(); add_attn()        # self-attention block
    add_ln(); add_attn()        # cross-attention block
    add_ln()                    # FF block
    params.append(w((D_MODEL, D_FF)))            # linear1 weight
    params.append(w((1, D_FF), 0.01))            # linear1 bias
    params.append(w((D_FF, D_MODEL)))            # linear2 weight
    params.append(w((1, D_MODEL), 0.01))         # linear2 bias
    return params


# ---- pure-JAX reference (mirrors the PyTorch forward in eval mode) -------------
def reference(x, enc, smask, cmask, params):
    (ln1_g, ln1_b, wq1, bq1, wk1, bk1, wv1, bv1, wo1, bo1,
     ln2_g, ln2_b, wq2, bq2, wk2, bk2, wv2, bv2, wo2, bo2,
     ln3_g, ln3_b, w1, b1, w2, b2) = params

    def ln(v, g, b):
        mu = jnp.mean(v, -1, keepdims=True)
        var = jnp.mean((v - mu) ** 2, -1, keepdims=True)
        return (v - mu) / jnp.sqrt(var + EPS) * g + b

    def mha(q_in, kv_in, wq, bq, wk, bk, wv, bv, wo, bo, mask):
        Bq, Sq, Dq = q_in.shape
        Q = q_in @ wq + bq
        K = kv_in @ wk + bk
        V = kv_in @ wv + bv
        Qh = Q.reshape(Bq, Sq, NUM_HEADS, D_K).transpose(0, 2, 1, 3)
        Kh = K.reshape(Bq, Sq, NUM_HEADS, D_K).transpose(0, 2, 1, 3)
        Vh = V.reshape(Bq, Sq, NUM_HEADS, D_K).transpose(0, 2, 1, 3)
        s = jnp.einsum('bhqd,bhkd->bhqk', Qh, Kh) / math.sqrt(D_K)
        s = jnp.where(mask[None, None] > 0, s, -jnp.inf)
        p = jax.nn.softmax(s, axis=-1)
        o = jnp.einsum('bhqk,bhkd->bhqd', p, Vh)
        o = o.transpose(0, 2, 1, 3).reshape(Bq, Sq, Dq)
        return o @ wo + bo

    n1 = ln(x, ln1_g, ln1_b)
    x = x + mha(n1, n1, wq1, bq1, wk1, bk1, wv1, bv1, wo1, bo1, smask)
    n2 = ln(x, ln2_g, ln2_b)
    x = x + mha(n2, enc, wq2, bq2, wk2, bk2, wv2, bv2, wo2, bo2, cmask)
    n3 = ln(x, ln3_g, ln3_b)
    h = n3 @ w1 + b1
    h = 0.5 * h * (1.0 + lax.erf(h * _INV_SQRT2))
    return x + (h @ w2 + b2)


if __name__ == "__main__":
    key = jax.random.PRNGKey(0)
    kx, ke = jax.random.split(key)
    x = jax.random.normal(kx, (B, S, D_MODEL), jnp.float32)
    enc = jax.random.normal(ke, (B, S, D_MODEL), jnp.float32)
    params = init_params()

    decoder = make_decoder_block(params)          # packs params / constants ONCE
    out = jax.block_until_ready(decoder(x, enc))  # per-call path: just the kernel

    smask, cmask = build_masks()
    ref = reference(x, enc, smask, cmask, params)
    assert out.shape == (B, S, D_MODEL)
    assert bool(jnp.isfinite(out).all())
    max_err = float(jnp.max(jnp.abs(out - ref)))
    assert max_err < 2e-2, f"mismatch vs reference: max abs err = {max_err}"

    # TODO(synk): KV-cache (use_cache/past_key_value), dropout, gradient
    # checkpointing and nan_to_num guards are training/decode plumbing and are
    # intentionally not implemented (identity at inference).
    print("KERNEL_OK")
</pallas_src>

<mosaic_0001>
module attributes {stable_mosaic.version = 11 : i64} {
  func.func @decoder_block_kernel(%arg0: memref<32x32xf32, #tpu.memory_space<vmem>>, %arg1: memref<32x32xf32, #tpu.memory_space<vmem>>, %arg2: memref<32x768xf32, #tpu.memory_space<vmem>>, %arg3: memref<64x32xf32, #tpu.memory_space<vmem>>, %arg4: memref<13x128xf32, #tpu.memory_space<vmem>>, %arg5: memref<132x128xf32, #tpu.memory_space<vmem>>, %arg6: memref<32x32xf32, #tpu.memory_space<vmem>>) attributes {dimension_semantics = [], scalar_prefetch = 0 : i64, scratch_operands = 0 : i64, tpu.core_type = #tpu.core_type<tc>} {
    %c0 = arith.constant 0 : index
    %c0_0 = arith.constant 0 : index
    %0 = vector.load %arg0[%c0, %c0_0] : memref<32x32xf32, #tpu.memory_space<vmem>>, vector<32x32xf32>
    %c0_1 = arith.constant 0 : index
    %c0_2 = arith.constant 0 : index
    %1 = vector.load %arg1[%c0_1, %c0_2] : memref<32x32xf32, #tpu.memory_space<vmem>>, vector<32x32xf32>
    %c0_3 = arith.constant 0 : index
    %c0_4 = arith.constant 0 : index
    %2 = vector.load %arg2[%c0_3, %c0_4] : memref<32x768xf32, #tpu.memory_space<vmem>>, vector<32x768xf32>
    %c0_5 = arith.constant 0 : index
    %c0_6 = arith.constant 0 : index
    %3 = vector.load %arg3[%c0_5, %c0_6] : memref<64x32xf32, #tpu.memory_space<vmem>>, vector<64x32xf32>
    %c0_7 = arith.constant 0 : index
    %c0_8 = arith.constant 0 : index
    %4 = vector.load %arg4[%c0_7, %c0_8] : memref<13x128xf32, #tpu.memory_space<vmem>>, vector<13x128xf32>
    %c0_9 = arith.constant 0 : index
    %c0_10 = arith.constant 0 : index
    %5 = vector.load %arg5[%c0_9, %c0_10] : memref<132x128xf32, #tpu.memory_space<vmem>>, vector<132x128xf32>
    %6 = vector.extract_strided_slice %2 {offsets = [0, 0], sizes = [32, 96], strides = [1, 1]} : vector<32x768xf32> to vector<32x96xf32>
    %7 = vector.extract_strided_slice %2 {offsets = [0, 128], sizes = [32, 32], strides = [1, 1]} : vector<32x768xf32> to vector<32x32xf32>
    %8 = vector.extract_strided_slice %2 {offsets = [0, 256], sizes = [32, 32], strides = [1, 1]} : vector<32x768xf32> to vector<32x32xf32>
    %9 = vector.extract_strided_slice %2 {offsets = [0, 384], sizes = [32, 64], strides = [1, 1]} : vector<32x768xf32> to vector<32x64xf32>
    %10 = vector.extract_strided_slice %2 {offsets = [0, 512], sizes = [32, 32], strides = [1, 1]} : vector<32x768xf32> to vector<32x32xf32>
    %11 = vector.extract_strided_slice %2 {offsets = [0, 640], sizes = [32, 64], strides = [1, 1]} : vector<32x768xf32> to vector<32x64xf32>
    %12 = vector.extract_strided_slice %4 {offsets = [0, 0], sizes = [1, 32], strides = [1, 1]} : vector<13x128xf32> to vector<1x32xf32>
    %13 = vector.extract_strided_slice %4 {offsets = [1, 0], sizes = [1, 32], strides = [1, 1]} : vector<13x128xf32> to vector<1x32xf32>
    %14 = vector.extract_strided_slice %4 {offsets = [2, 0], sizes = [1, 96], strides = [1, 1]} : vector<13x128xf32> to vector<1x96xf32>
    %15 = vector.extract_strided_slice %4 {offsets = [3, 0], sizes = [1, 32], strides = [1, 1]} : vector<13x128xf32> to vector<1x32xf32>
    %16 = vector.extract_strided_slice %4 {offsets = [4, 0], sizes = [1, 32], strides = [1, 1]} : vector<13x128xf32> to vector<1x32xf32>
    %17 = vector.extract_strided_slice %4 {offsets = [5, 0], sizes = [1, 32], strides = [1, 1]} : vector<13x128xf32> to vector<1x32xf32>
    %18 = vector.extract_strided_slice %4 {offsets = [6, 0], sizes = [1, 32], strides = [1, 1]} : vector<13x128xf32> to vector<1x32xf32>
    %19 = vector.extract_strided_slice %4 {offsets = [7, 0], sizes = [1, 64], strides = [1, 1]} : vector<13x128xf32> to vector<1x64xf32>
    %20 = vector.extract_strided_slice %4 {offsets = [8, 0], sizes = [1, 32], strides = [1, 1]} : vector<13x128xf32> to vector<1x32xf32>
    %21 = vector.extract_strided_slice %4 {offsets = [9, 0], sizes = [1, 32], strides = [1, 1]} : vector<13x128xf32> to vector<1x32xf32>
    %22 = vector.extract_strided_slice %4 {offsets = [10, 0], sizes = [1, 32], strides = [1, 1]} : vector<13x128xf32> to vector<1x32xf32>
    %23 = vector.extract_strided_slice %4 {offsets = [11, 0], sizes = [1, 64], strides = [1, 1]} : vector<13x128xf32> to vector<1x64xf32>
    %24 = vector.extract_strided_slice %4 {offsets = [12, 0], sizes = [1, 32], strides = [1, 1]} : vector<13x128xf32> to vector<1x32xf32>
    %25 = vector.extract_strided_slice %5 {offsets = [0, 0], sizes = [32, 128], strides = [1, 1]} : vector<132x128xf32> to vector<32x128xf32>
    %26 = vector.extract_strided_slice %5 {offsets = [32, 0], sizes = [32, 128], strides = [1, 1]} : vector<132x128xf32> to vector<32x128xf32>
    %27 = vector.extract_strided_slice %5 {offsets = [64, 0], sizes = [32, 128], strides = [1, 1]} : vector<132x128xf32> to vector<32x128xf32>
    %28 = vector.extract_strided_slice %5 {offsets = [96, 0], sizes = [32, 128], strides = [1, 1]} : vector<132x128xf32> to vector<32x128xf32>
    %29 = vector.extract_strided_slice %5 {offsets = [128, 0], sizes = [4, 128], strides = [1, 1]} : vector<132x128xf32> to vector<4x128xf32>
    %cst = arith.constant dense<0.000000e+00> : vector<32xf32>
    %30 = vector.multi_reduction <add>, %0, %cst [1] : vector<32x32xf32> to vector<32xf32>
    %31 = vector.shape_cast %30 : vector<32xf32> to vector<32x1xf32>
    %cst_11 = arith.constant 3.200000e+01 : f32
    %32 = vector.broadcast %cst_11 : f32 to vector<32x1xf32>
    %33 = arith.divf %31, %32 : vector<32x1xf32>
    %34 = vector.broadcast %33 : vector<32x1xf32> to vector<32x32xf32>
    %35 = arith.subf %0, %34 : vector<32x32xf32>
    %36 = arith.mulf %35, %35 : vector<32x32xf32>
    %cst_12 = arith.constant dense<0.000000e+00> : vector<32xf32>
    %37 = vector.multi_reduction <add>, %36, %cst_12 [1] : vector<32x32xf32> to vector<32xf32>
    %38 = vector.shape_cast %37 : vector<32xf32> to vector<32x1xf32>
    %cst_13 = arith.constant 3.200000e+01 : f32
    %39 = vector.broadcast %cst_13 : f32 to vector<32x1xf32>
    %40 = arith.divf %38, %39 : vector<32x1xf32>
    %41 = vector.broadcast %33 : vector<32x1xf32> to vector<32x32xf32>
    %42 = arith.subf %0, %41 : vector<32x32xf32>
    %cst_14 = arith.constant 9.99999974E-6 : f32
    %43 = vector.broadcast %cst_14 : f32 to vector<32x1xf32>
    %44 = arith.addf %40, %43 : vector<32x1xf32>
    %45 = math.rsqrt %44 : vector<32x1xf32>
    %46 = vector.broadcast %45 : vector<32x1xf32> to vector<32x32xf32>
    %47 = arith.mulf %42, %46 : vector<32x32xf32>
    %48 = vector.broadcast %12 : vector<1x32xf32> to vector<32x32xf32>
    %49 = arith.mulf %47, %48 : vector<32x32xf32>
    %50 = vector.broadcast %13 : vector<1x32xf32> to vector<32x32xf32>
    %51 = arith.addf %49, %50 : vector<32x32xf32>
    %cst_15 = arith.constant dense<0.000000e+00> : vector<32x96xf32>
    %52 = tpu.matmul %51, %6, %cst_15 {dimension_numbers = #tpu.dot_dimension_numbers<[1], [0], [0], [1], [0, 0, 1, 1], [], []>} : vector<32x32xf32>, vector<32x96xf32>, vector<32x96xf32> -> vector<32x96xf32>
    %53 = vector.broadcast %14 : vector<1x96xf32> to vector<32x96xf32>
    %54 = arith.addf %52, %53 : vector<32x96xf32>
    %55 = vector.extract_strided_slice %54 {offsets = [0, 0], sizes = [32, 32], strides = [1, 1]} : vector<32x96xf32> to vector<32x32xf32>
    %56 = vector.extract_strided_slice %54 {offsets = [0, 32], sizes = [32, 32], strides = [1, 1]} : vector<32x96xf32> to vector<32x32xf32>
    %57 = vector.extract_strided_slice %54 {offsets = [0, 64], sizes = [32, 32], strides = [1, 1]} : vector<32x96xf32> to vector<32x32xf32>
    %58 = tpu.transpose %56, [1, 0] : vector<32x32xf32> -> vector<32x32xf32>
    %cst_16 = arith.constant dense<0.000000e+00> : vector<32x128xf32>
    %59 = tpu.matmul %58, %27, %cst_16 {dimension_numbers = #tpu.dot_dimension_numbers<[1], [0], [0], [1], [0, 0, 1, 1], [], []>} : vector<32x32xf32>, vector<32x128xf32>, vector<32x128xf32> -> vector<32x128xf32>
    %60 = arith.mulf %59, %28 : vector<32x128xf32>
    %61 = tpu.transpose %57, [1, 0] : vector<32x32xf32> -> vector<32x32xf32>
    %cst_17 = arith.constant dense<0.000000e+00> : vector<32x128xf32>
    %62 = tpu.matmul %61, %27, %cst_17 {dimension_numbers = #tpu.dot_dimension_numbers<[1], [0], [0], [1], [0, 0, 1, 1], [], []>} : vector<32x32xf32>, vector<32x128xf32>, vector<32x128xf32> -> vector<32x128xf32>
    %63 = arith.mulf %62, %28 : vector<32x128xf32>
    %cst_18 = arith.constant dense<0.000000e+00> : vector<32x128xf32>
    %64 = tpu.matmul %55, %60, %cst_18 {dimension_numbers = #tpu.dot_dimension_numbers<[1], [0], [0], [1], [0, 0, 1, 1], [], []>} : vector<32x32xf32>, vector<32x128xf32>, vector<32x128xf32> -> vector<32x128xf32>
    %65 = arith.addf %64, %25 : vector<32x128xf32>
    %66 = vector.extract_strided_slice %65 {offsets = [0, 0], sizes = [32, 32], strides = [1, 1]} : vector<32x128xf32> to vector<32x32xf32>
    %cst_19 = arith.constant dense<0xFF800000> : vector<32xf32>
    %67 = vector.multi_reduction <maximumf>, %66, %cst_19 [1] : vector<32x32xf32> to vector<32xf32>
    %68 = vector.shape_cast %67 : vector<32xf32> to vector<32x1xf32>
    %69 = vector.extract_strided_slice %29 {offsets = [0, 0], sizes = [1, 128], strides = [1, 1]} : vector<4x128xf32> to vector<1x128xf32>
    %70 = vector.broadcast %68 : vector<32x1xf32> to vector<32x128xf32>
    %71 = vector.broadcast %69 : vector<1x128xf32> to vector<32x128xf32>
    %72 = arith.mulf %70, %71 : vector<32x128xf32>
    %73 = vector.extract_strided_slice %65 {offsets = [0, 32], sizes = [32, 32], strides = [1, 1]} : vector<32x128xf32> to vector<32x32xf32>
    %cst_20 = arith.constant dense<0xFF800000> : vector<32xf32>
    %74 = vector.multi_reduction <maximumf>, %73, %cst_20 [1] : vector<32x32xf32> to vector<32xf32>
    %75 = vector.shape_cast %74 : vector<32xf32> to vector<32x1xf32>
    %76 = vector.extract_strided_slice %29 {offsets = [1, 0], sizes = [1, 128], strides = [1, 1]} : vector<4x128xf32> to vector<1x128xf32>
    %77 = vector.broadcast %75 : vector<32x1xf32> to vector<32x128xf32>
    %78 = vector.broadcast %76 : vector<1x128xf32> to vector<32x128xf32>
    %79 = arith.mulf %77, %78 : vector<32x128xf32>
    %80 = arith.addf %72, %79 : vector<32x128xf32>
    %81 = vector.extract_strided_slice %65 {offsets = [0, 64], sizes = [32, 32], strides = [1, 1]} : vector<32x128xf32> to vector<32x32xf32>
    %cst_21 = arith.constant dense<0xFF800000> : vector<32xf32>
    %82 = vector.multi_reduction <maximumf>, %81, %cst_21 [1] : vector<32x32xf32> to vector<32xf32>
    %83 = vector.shape_cast %82 : vector<32xf32> to vector<32x1xf32>
    %84 = vector.extract_strided_slice %29 {offsets = [2, 0], sizes = [1, 128], strides = [1, 1]} : vector<4x128xf32> to vector<1x128xf32>
    %85 = vector.broadcast %83 : vector<32x1xf32> to vector<32x128xf32>
    %86 = vector.broadcast %84 : vector<1x128xf32> to vector<32x128xf32>
    %87 = arith.mulf %85, %86 : vector<32x128xf32>
    %88 = arith.addf %80, %87 : vector<32x128xf32>
    %89 = vector.extract_strided_slice %65 {offsets = [0, 96], sizes = [32, 32], strides = [1, 1]} : vector<32x128xf32> to vector<32x32xf32>
    %cst_22 = arith.constant dense<0xFF800000> : vector<32xf32>
    %90 = vector.multi_reduction <maximumf>, %89, %cst_22 [1] : vector<32x32xf32> to vector<32xf32>
    %91 = vector.shape_cast %90 : vector<32xf32> to vector<32x1xf32>
    %92 = vector.extract_strided_slice %29 {offsets = [3, 0], sizes = [1, 128], strides = [1, 1]} : vector<4x128xf32> to vector<1x128xf32>
    %93 = vector.broadcast %91 : vector<32x1xf32> to vector<32x128xf32>
    %94 = vector.broadcast %92 : vector<1x128xf32> to vector<32x128xf32>
    %95 = arith.mulf %93, %94 : vector<32x128xf32>
    %96 = arith.addf %88, %95 : vector<32x128xf32>
    %97 = arith.subf %65, %96 : vector<32x128xf32>
    %98 = math.exp %97 : vector<32x128xf32>
    %cst_23 = arith.constant dense<0.000000e+00> : vector<32x4xf32>
    %99 = tpu.matmul %98, %29, %cst_23 {dimension_numbers = #tpu.dot_dimension_numbers<[1], [1], [0], [0], [0, 0, 1, 0], [], []>} : vector<32x128xf32>, vector<4x128xf32>, vector<32x4xf32> -> vector<32x4xf32>
    %100 = tpu.reciprocal %99 {approx = true} : vector<32x4xf32> -> vector<32x4xf32>
    %cst_24 = arith.constant dense<0.000000e+00> : vector<32x128xf32>
    %101 = tpu.matmul %100, %29, %cst_24 {dimension_numbers = #tpu.dot_dimension_numbers<[1], [0], [0], [1], [0, 0, 1, 1], [], []>} : vector<32x4xf32>, vector<4x128xf32>, vector<32x128xf32> -> vector<32x128xf32>
    %102 = arith.mulf %98, %101 : vector<32x128xf32>
    %cst_25 = arith.constant dense<0.000000e+00> : vector<32x32xf32>
    %103 = tpu.matmul %102, %63, %cst_25 {dimension_numbers = #tpu.dot_dimension_numbers<[1], [1], [0], [0], [0, 0, 1, 0], [], []>} : vector<32x128xf32>, vector<32x128xf32>, vector<32x32xf32> -> vector<32x32xf32>
    %cst_26 = arith.constant dense<0.000000e+00> : vector<32x32xf32>
    %104 = tpu.matmul %103, %7, %cst_26 {dimension_numbers = #tpu.dot_dimension_numbers<[1], [0], [0], [1], [0, 0, 1, 1], [], []>} : vector<32x32xf32>, vector<32x32xf32>, vector<32x32xf32> -> vector<32x32xf32>
    %105 = vector.broadcast %15 : vector<1x32xf32> to vector<32x32xf32>
    %106 = arith.addf %104, %105 : vector<32x32xf32>
    %107 = arith.addf %0, %106 : vector<32x32xf32>
    %cst_27 = arith.constant dense<0.000000e+00> : vector<32xf32>
    %108 = vector.multi_reduction <add>, %107, %cst_27 [1] : vector<32x32xf32> to vector<32xf32>
    %109 = vector.shape_cast %108 : vector<32xf32> to vector<32x1xf32>
    %cst_28 = arith.constant 3.200000e+01 : f32
    %110 = vector.broadcast %cst_28 : f32 to vector<32x1xf32>
    %111 = arith.divf %109, %110 : vector<32x1xf32>
    %112 = vector.broadcast %111 : vector<32x1xf32> to vector<32x32xf32>
    %113 = arith.subf %107, %112 : vector<32x32xf32>
    %114 = arith.mulf %113, %113 : vector<32x32xf32>
    %cst_29 = arith.constant dense<0.000000e+00> : vector<32xf32>
    %115 = vector.multi_reduction <add>, %114, %cst_29 [1] : vector<32x32xf32> to vector<32xf32>
    %116 = vector.shape_cast %115 : vector<32xf32> to vector<32x1xf32>
    %cst_30 = arith.constant 3.200000e+01 : f32
    %117 = vector.broadcast %cst_30 : f32 to vector<32x1xf32>
    %118 = arith.divf %116, %117 : vector<32x1xf32>
    %119 = vector.broadcast %111 : vector<32x1xf32> to vector<32x32xf32>
    %120 = arith.subf %107, %119 : vector<32x32xf32>
    %cst_31 = arith.constant 9.99999974E-6 : f32
    %121 = vector.broadcast %cst_31 : f32 to vector<32x1xf32>
    %122 = arith.addf %118, %121 : vector<32x1xf32>
    %123 = math.rsqrt %122 : vector<32x1xf32>
    %124 = vector.broadcast %123 : vector<32x1xf32> to vector<32x32xf32>
    %125 = arith.mulf %120, %124 : vector<32x32xf32>
    %126 = vector.broadcast %16 : vector<1x32xf32> to vector<32x32xf32>
    %127 = arith.mulf %125, %126 : vector<32x32xf32>
    %128 = vector.broadcast %17 : vector<1x32xf32> to vector<32x32xf32>
    %129 = arith.addf %127, %128 : vector<32x32xf32>
    %cst_32 = arith.constant dense<0.000000e+00> : vector<32x32xf32>
    %130 = tpu.matmul %129, %8, %cst_32 {dimension_numbers = #tpu.dot_dimension_numbers<[1], [0], [0], [1], [0, 0, 1, 1], [], []>} : vector<32x32xf32>, vector<32x32xf32>, vector<32x32xf32> -> vector<32x32xf32>
    %131 = vector.broadcast %18 : vector<1x32xf32> to vector<32x32xf32>
    %132 = arith.addf %130, %131 : vector<32x32xf32>
    %cst_33 = arith.constant dense<0.000000e+00> : vector<32x64xf32>
    %133 = tpu.matmul %1, %9, %cst_33 {dimension_numbers = #tpu.dot_dimension_numbers<[1], [0], [0], [1], [0, 0, 1, 1], [], []>} : vector<32x32xf32>, vector<32x64xf32>, vector<32x64xf32> -> vector<32x64xf32>
    %134 = vector.broadcast %19 : vector<1x64xf32> to vector<32x64xf32>
    %135 = arith.addf %133, %134 : vector<32x64xf32>
    %136 = vector.extract_strided_slice %135 {offsets = [0, 0], sizes = [32, 32], strides = [1, 1]} : vector<32x64xf32> to vector<32x32xf32>
    %137 = vector.extract_strided_slice %135 {offsets = [0, 32], sizes = [32, 32], strides = [1, 1]} : vector<32x64xf32> to vector<32x32xf32>
    %138 = tpu.transpose %136, [1, 0] : vector<32x32xf32> -> vector<32x32xf32>
    %cst_34 = arith.constant dense<0.000000e+00> : vector<32x128xf32>
    %139 = tpu.matmul %138, %27, %cst_34 {dimension_numbers = #tpu.dot_dimension_numbers<[1], [0], [0], [1], [0, 0, 1, 1], [], []>} : vector<32x32xf32>, vector<32x128xf32>, vector<32x128xf32> -> vector<32x128xf32>
    %140 = arith.mulf %139, %28 : vector<32x128xf32>
    %141 = tpu.transpose %137, [1, 0] : vector<32x32xf32> -> vector<32x32xf32>
    %cst_35 = arith.constant dense<0.000000e+00> : vector<32x128xf32>
    %142 = tpu.matmul %141, %27, %cst_35 {dimension_numbers = #tpu.dot_dimension_numbers<[1], [0], [0], [1], [0, 0, 1, 1], [], []>} : vector<32x32xf32>, vector<32x128xf32>, vector<32x128xf32> -> vector<32x128xf32>
    %143 = arith.mulf %142, %28 : vector<32x128xf32>
    %cst_36 = arith.constant dense<0.000000e+00> : vector<32x128xf32>
    %144 = tpu.matmul %132, %140, %cst_36 {dimension_numbers = #tpu.dot_dimension_numbers<[1], [0], [0], [1], [0, 0, 1, 1], [], []>} : vector<32x32xf32>, vector<32x128xf32>, vector<32x128xf32> -> vector<32x128xf32>
    %145 = arith.addf %144, %26 : vector<32x128xf32>
    %146 = vector.extract_strided_slice %145 {offsets = [0, 0], sizes = [32, 32], strides = [1, 1]} : vector<32x128xf32> to vector<32x32xf32>
    %cst_37 = arith.constant dense<0xFF800000> : vector<32xf32>
    %147 = vector.multi_reduction <maximumf>, %146, %cst_37 [1] : vector<32x32xf32> to vector<32xf32>
    %148 = vector.shape_cast %147 : vector<32xf32> to vector<32x1xf32>
    %149 = vector.extract_strided_slice %29 {offsets = [0, 0], sizes = [1, 128], strides = [1, 1]} : vector<4x128xf32> to vector<1x128xf32>
    %150 = vector.broadcast %148 : vector<32x1xf32> to vector<32x128xf32>
    %151 = vector.broadcast %149 : vector<1x128xf32> to vector<32x128xf32>
    %152 = arith.mulf %150, %151 : vector<32x128xf32>
    %153 = vector.extract_strided_slice %145 {offsets = [0, 32], sizes = [32, 32], strides = [1, 1]} : vector<32x128xf32> to vector<32x32xf32>
    %cst_38 = arith.constant dense<0xFF800000> : vector<32xf32>
    %154 = vector.multi_reduction <maximumf>, %153, %cst_38 [1] : vector<32x32xf32> to vector<32xf32>
    %155 = vector.shape_cast %154 : vector<32xf32> to vector<32x1xf32>
    %156 = vector.extract_strided_slice %29 {offsets = [1, 0], sizes = [1, 128], strides = [1, 1]} : vector<4x128xf32> to vector<1x128xf32>
    %157 = vector.broadcast %155 : vector<32x1xf32> to vector<32x128xf32>
    %158 = vector.broadcast %156 : vector<1x128xf32> to vector<32x128xf32>
    %159 = arith.mulf %157, %158 : vector<32x128xf32>
    %160 = arith.addf %152, %159 : vector<32x128xf32>
    %161 = vector.extract_strided_slice %145 {offsets = [0, 64], sizes = [32, 32], strides = [1, 1]} : vector<32x128xf32> to vector<32x32xf32>
    %cst_39 = arith.constant dense<0xFF800000> : vector<32xf32>
    %162 = vector.multi_reduction <maximumf>, %161, %cst_39 [1] : vector<32x32xf32> to vector<32xf32>
    %163 = vector.shape_cast %162 : vector<32xf32> to vector<32x1xf32>
    %164 = vector.extract_strided_slice %29 {offsets = [2, 0], sizes = [1, 128], strides = [1, 1]} : vector<4x128xf32> to vector<1x128xf32>
    %165 = vector.broadcast %163 : vector<32x1xf32> to vector<32x128xf32>
    %166 = vector.broadcast %164 : vector<1x128xf32> to vector<32x128xf32>
    %167 = arith.mulf %165, %166 : vector<32x128xf32>
    %168 = arith.addf %160, %167 : vector<32x128xf32>
    %169 = vector.extract_strided_slice %145 {offsets = [0, 96], sizes = [32, 32], strides = [1, 1]} : vector<32x128xf32> to vector<32x32xf32>
    %cst_40 = arith.constant dense<0xFF800000> : vector<32xf32>
    %170 = vector.multi_reduction <maximumf>, %169, %cst_40 [1] : vector<32x32xf32> to vector<32xf32>
    %171 = vector.shape_cast %170 : vector<32xf32> to vector<32x1xf32>
    %172 = vector.extract_strided_slice %29 {offsets = [3, 0], sizes = [1, 128], strides = [1, 1]} : vector<4x128xf32> to vector<1x128xf32>
    %173 = vector.broadcast %171 : vector<32x1xf32> to vector<32x128xf32>
    %174 = vector.broadcast %172 : vector<1x128xf32> to vector<32x128xf32>
    %175 = arith.mulf %173, %174 : vector<32x128xf32>
    %176 = arith.addf %168, %175 : vector<32x128xf32>
    %177 = arith.subf %145, %176 : vector<32x128xf32>
    %178 = math.exp %177 : vector<32x128xf32>
    %cst_41 = arith.constant dense<0.000000e+00> : vector<32x4xf32>
    %179 = tpu.matmul %178, %29, %cst_41 {dimension_numbers = #tpu.dot_dimension_numbers<[1], [1], [0], [0], [0, 0, 1, 0], [], []>} : vector<32x128xf32>, vector<4x128xf32>, vector<32x4xf32> -> vector<32x4xf32>
    %180 = tpu.reciprocal %179 {approx = true} : vector<32x4xf32> -> vector<32x4xf32>
    %cst_42 = arith.constant dense<0.000000e+00> : vector<32x128xf32>
    %181 = tpu.matmul %180, %29, %cst_42 {dimension_numbers = #tpu.dot_dimension_numbers<[1], [0], [0], [1], [0, 0, 1, 1], [], []>} : vector<32x4xf32>, vector<4x128xf32>, vector<32x128xf32> -> vector<32x128xf32>
    %182 = arith.mulf %178, %181 : vector<32x128xf32>
    %cst_43 = arith.constant dense<0.000000e+00> : vector<32x32xf32>
    %183 = tpu.matmul %182, %143, %cst_43 {dimension_numbers = #tpu.dot_dimension_numbers<[1], [1], [0], [0], [0, 0, 1, 0], [], []>} : vector<32x128xf32>, vector<32x128xf32>, vector<32x32xf32> -> vector<32x32xf32>
    %cst_44 = arith.constant dense<0.000000e+00> : vector<32x32xf32>
    %184 = tpu.matmul %183, %10, %cst_44 {dimension_numbers = #tpu.dot_dimension_numbers<[1], [0], [0], [1], [0, 0, 1, 1], [], []>} : vector<32x32xf32>, vector<32x32xf32>, vector<32x32xf32> -> vector<32x32xf32>
    %185 = vector.broadcast %20 : vector<1x32xf32> to vector<32x32xf32>
    %186 = arith.addf %184, %185 : vector<32x32xf32>
    %187 = arith.addf %107, %186 : vector<32x32xf32>
    %cst_45 = arith.constant dense<0.000000e+00> : vector<32xf32>
    %188 = vector.multi_reduction <add>, %187, %cst_45 [1] : vector<32x32xf32> to vector<32xf32>
    %189 = vector.shape_cast %188 : vector<32xf32> to vector<32x1xf32>
    %cst_46 = arith.constant 3.200000e+01 : f32
    %190 = vector.broadcast %cst_46 : f32 to vector<32x1xf32>
    %191 = arith.divf %189, %190 : vector<32x1xf32>
    %192 = vector.broadcast %191 : vector<32x1xf32> to vector<32x32xf32>
    %193 = arith.subf %187, %192 : vector<32x32xf32>
    %194 = arith.mulf %193, %193 : vector<32x32xf32>
    %cst_47 = arith.constant dense<0.000000e+00> : vector<32xf32>
    %195 = vector.multi_reduction <add>, %194, %cst_47 [1] : vector<32x32xf32> to vector<32xf32>
    %196 = vector.shape_cast %195 : vector<32xf32> to vector<32x1xf32>
    %cst_48 = arith.constant 3.200000e+01 : f32
    %197 = vector.broadcast %cst_48 : f32 to vector<32x1xf32>
    %198 = arith.divf %196, %197 : vector<32x1xf32>
    %199 = vector.broadcast %191 : vector<32x1xf32> to vector<32x32xf32>
    %200 = arith.subf %187, %199 : vector<32x32xf32>
    %cst_49 = arith.constant 9.99999974E-6 : f32
    %201 = vector.broadcast %cst_49 : f32 to vector<32x1xf32>
    %202 = arith.addf %198, %201 : vector<32x1xf32>
    %203 = math.rsqrt %202 : vector<32x1xf32>
    %204 = vector.broadcast %203 : vector<32x1xf32> to vector<32x32xf32>
    %205 = arith.mulf %200, %204 : vector<32x32xf32>
    %206 = vector.broadcast %21 : vector<1x32xf32> to vector<32x32xf32>
    %207 = arith.mulf %205, %206 : vector<32x32xf32>
    %208 = vector.broadcast %22 : vector<1x32xf32> to vector<32x32xf32>
    %209 = arith.addf %207, %208 : vector<32x32xf32>
    %cst_50 = arith.constant dense<0.000000e+00> : vector<32x64xf32>
    %210 = tpu.matmul %209, %11, %cst_50 {dimension_numbers = #tpu.dot_dimension_numbers<[1], [0], [0], [1], [0, 0, 1, 1], [], []>} : vector<32x32xf32>, vector<32x64xf32>, vector<32x64xf32> -> vector<32x64xf32>
    %211 = vector.broadcast %23 : vector<1x64xf32> to vector<32x64xf32>
    %212 = arith.addf %210, %211 : vector<32x64xf32>
    %cst_51 = arith.constant 5.000000e-01 : f32
    %213 = vector.broadcast %cst_51 : f32 to vector<32x64xf32>
    %214 = arith.mulf %213, %212 : vector<32x64xf32>
    %cst_52 = arith.constant 0.707106769 : f32
    %215 = vector.broadcast %cst_52 : f32 to vector<32x64xf32>
    %216 = arith.mulf %212, %215 : vector<32x64xf32>
    %217 = math.erf %216 : vector<32x64xf32>
    %cst_53 = arith.constant 1.000000e+00 : f32
    %218 = vector.broadcast %cst_53 : f32 to vector<32x64xf32>
    %219 = arith.addf %218, %217 : vector<32x64xf32>
    %220 = arith.mulf %214, %219 : vector<32x64xf32>
    %cst_54 = arith.constant dense<0.000000e+00> : vector<32x32xf32>
    %221 = tpu.matmul %220, %3, %cst_54 {dimension_numbers = #tpu.dot_dimension_numbers<[1], [0], [0], [1], [0, 0, 1, 1], [], []>} : vector<32x64xf32>, vector<64x32xf32>, vector<32x32xf32> -> vector<32x32xf32>
    %222 = arith.addf %187, %221 : vector<32x32xf32>
    %223 = vector.broadcast %24 : vector<1x32xf32> to vector<32x32xf32>
    %224 = arith.addf %222, %223 : vector<32x32xf32>
    %c0_55 = arith.constant 0 : index
    %c0_56 = arith.constant 0 : index
    %225 = vector.load %arg6[%c0_55, %c0_56] : memref<32x32xf32, #tpu.memory_space<vmem>>, vector<32x32xf32>
    tpu.vector_store %arg6[%c0_55, %c0_56], %224 {strides = array<i32>} : memref<32x32xf32, #tpu.memory_space<vmem>>, vector<32x32xf32>,
    return
  }
}

</mosaic_0001>

<llo_original>
// kernel: apply.1
$region0: #{apply.1}
  #allocation0 [shape = 'u32[]', space=smem, size = 0x4, offset = 0x4, fixed_abs, tag = 'smem constant byte address 0x4 - core index']
  #allocation1 [shape = 'u32[144,128]{1,0:T(1,128)}', space=vmem, size = 0x12000, scoped, tag = 'internal scratch']
  %s0 = inlined_call_operand.vmem [shape: f32[32,32], index: 0, kind: input, shape index: {}, may-alias: {0,6}]
  %s1 = inlined_call_operand.vmem [shape: f32[32,32], index: 1, kind: input, shape index: {}]
  %s2 = inlined_call_operand.hbm [shape: f32[32,768], index: 2, kind: input, shape index: {}]
  %s3 = inlined_call_operand.hbm [shape: f32[64,32], index: 3, kind: input, shape index: {}]
  %s4 = inlined_call_operand.hbm [shape: f32[13,128], index: 4, kind: input, shape index: {}]
  %s5 = inlined_call_operand.hbm [shape: f32[132,128], index: 5, kind: input, shape index: {}]
  %s6 = inlined_call_operand.vmem [shape: f32[32,32], index: 6, kind: output, shape index: {}, may-alias: {0,6}]
  %s7 = sld [smem:[#allocation0]]
  $region50: #{apply.1} parent=0
    _
  %s9 = ssub.s32 1, %s7
  %s10 = scalar_select 0, %s9, %s7
  $region1: #{apply.1} parent=0
    #allocation2 [shape = 'u8[98304]{0}', space=vmem, size = 0x18000, scoped, tag = 'input window, operand 2, single buffered']
    #allocation3 [shape = 's32[1]{0}', space=sflag, size = 0x4, scoped, tag = 'scoped memory for apply.1']
    #allocation4 [shape = 'u8[32768]{0}', space=vmem, size = 0x8000, scoped, tag = 'input window, operand 3, single buffered']
    #allocation5 [shape = 's32[1]{0}', space=sflag, size = 0x4, scoped, tag = 'scoped memory for apply.1']
    #allocation6 [shape = 'u8[8192]{0}', space=vmem, size = 0x2000, scoped, tag = 'input window, operand 4, single buffered']
    #allocation7 [shape = 'u8[69632]{0}', space=vmem, size = 0x11000, scoped, tag = 'input window, operand 5, single buffered']
    #allocation8 [shape = 's32[1]{0}', space=sflag, size = 0x4, scoped, tag = 'scoped memory for apply.1']
    %11 = vsyncpa [#allocation3], 0
    %12 = vsyncpa [#allocation5], 0
    %13 = vsyncpa [#allocation8], 0
    // Predicated region
    $region2: #{apply.1} parent=1 // pred_check
      _
    $region3: #{apply.1} parent=1 // pred_check_branch
      %15 = sbr.rel (0) target = $region5
    $region4: #{apply.1} parent=1 // pred_region
      _
    $region5: #{apply.1} parent=1 // pred_fallthru
      _
    // Predicated region
    $region6: #{apply.1} parent=1 // pred_check
      _
    $region7: #{apply.1} parent=1 // pred_check_branch
      %17 = sbr.rel (0) target = $region9
    $region8: #{apply.1} parent=1 // pred_region
      _
    $region9: #{apply.1} parent=1 // pred_fallthru
      _
    // Predicated region
    $region10: #{apply.1} parent=1 // pred_check
      _
    $region11: #{apply.1} parent=1 // pred_check_branch
      %19 = sbr.rel (0) target = $region13
    $region12: #{apply.1} parent=1 // pred_region
      %s21 = ssub.s32 3072, 3072
      %22 = vsyncadd [#allocation3], %s21
      %s23 = sshll.u32 [#allocation2], 4
      %s24 = int_to_ptr.vmem [resolvable:$true] %s23
      %29 = dma.hbm_to_vmem [thread:$0]  %s2, 3072, %s24, [#allocation3], 768, 768, 48
    $region13: #{apply.1} parent=1 // pred_fallthru
      _
    // Predicated region
    $region14: #{apply.1} parent=1 // pred_check
      _
    $region15: #{apply.1} parent=1 // pred_check_branch
      %31 = sbr.rel (0) target = $region17
    $region16: #{apply.1} parent=1 // pred_region
      %s33 = ssub.s32 1024, 1024
      %34 = vsyncadd [#allocation5], %s33
      %s35 = sshll.u32 [#allocation4], 4
      %s36 = int_to_ptr.vmem [resolvable:$true] %s35
      %41 = dma.hbm_to_vmem [thread:$0]  %s3, 1024, %s36, [#allocation5], 128, 128, 8
    $region17: #{apply.1} parent=1 // pred_fallthru
      _
    // Predicated region
    $region18: #{apply.1} parent=1 // pred_check
      _
    $region19: #{apply.1} parent=1 // pred_check_branch
      %43 = sbr.rel (0) target = $region21
    $region20: #{apply.1} parent=1 // pred_region
      %s45 = ssub.s32 256, 256
      %46 = vsyncadd [#allocation5], %s45
      %s47 = sshll.u32 [#allocation6], 4
      %s48 = int_to_ptr.vmem [resolvable:$true] %s47
      %53 = dma.hbm_to_vmem [thread:$0]  %s4, 256, %s48, [#allocation5], 128, 128, 8
    $region21: #{apply.1} parent=1 // pred_fallthru
      _
    // Predicated region
    $region22: #{apply.1} parent=1 // pred_check
      _
    $region23: #{apply.1} parent=1 // pred_check_branch
      %55 = sbr.rel (0) target = $region25
    $region24: #{apply.1} parent=1 // pred_region
      %s57 = ssub.s32 2176, 2176
      %58 = vsyncadd [#allocation8], %s57
      %s59 = sshll.u32 [#allocation7], 4
      %s60 = int_to_ptr.vmem [resolvable:$true] %s59
      %65 = dma.hbm_to_vmem [thread:$0]  %s5, 2176, %s60, [#allocation8], 128, 128, 8
    $region25: #{apply.1} parent=1 // pred_fallthru
      _
    // Predicated region
    $region26: #{apply.1} parent=1 // pred_check
      _
    $region27: #{apply.1} parent=1 // pred_check_branch
      %67 = sbr.rel (0) target = $region29
    $region28: #{apply.1} parent=1 // pred_region
      %68 = dma.done [#allocation3], 3072
    $region29: #{apply.1} parent=1 // pred_fallthru
      _
    // Predicated region
    $region30: #{apply.1} parent=1 // pred_check
      _
    $region31: #{apply.1} parent=1 // pred_check_branch
      %70 = sbr.rel (0) target = $region33
    $region32: #{apply.1} parent=1 // pred_region
      %71 = dma.done [#allocation5], 1024
    $region33: #{apply.1} parent=1 // pred_fallthru
      _
    // Predicated region
    $region34: #{apply.1} parent=1 // pred_check
      _
    $region35: #{apply.1} parent=1 // pred_check_branch
      %73 = sbr.rel (0) target = $region37
    $region36: #{apply.1} parent=1 // pred_region
      %74 = dma.done [#allocation5], 256
    $region37: #{apply.1} parent=1 // pred_fallthru
      _
    // Predicated region
    $region38: #{apply.1} parent=1 // pred_check
      _
    $region39: #{apply.1} parent=1 // pred_check_branch
      %76 = sbr.rel (0) target = $region41
    $region40: #{apply.1} parent=1 // pred_region
      %77 = dma.done [#allocation8], 2176
    $region41: #{apply.1} parent=1 // pred_fallthru
      _
    %v78 = vld [vmem:[%s0] sm:$0xff]
    %v79 = vld [vmem:[%s0 + $0x8] sm:$0xff]
    %v80 = vld [vmem:[%s0 + $0x10] sm:$0xff]
    %v81 = vld [vmem:[%s0 + $0x18] sm:$0xff]
    %v82 = vld [vmem:[%s1] sm:$0xff]
    %v83 = vld [vmem:[%s1 + $0x8] sm:$0xff]
    %v84 = vld [vmem:[%s1 + $0x10] sm:$0xff]
    %v85 = vld [vmem:[%s1 + $0x18] sm:$0xff]
    %v86 = vld [vmem:[#allocation2] sm:$0xff]
    %v87 = vld [vmem:[#allocation2 + $0x8] sm:$0xff]
    %v88 = vld [vmem:[#allocation2 + $0x10] sm:$0xff]
    %v89 = vld [vmem:[#allocation2 + $0x18] sm:$0xff]
    %v90 = vld [vmem:[#allocation2 + $0x20] sm:$0xff]
    %v91 = vld [vmem:[#allocation2 + $0x28] sm:$0xff]
    %v92 = vld [vmem:[#allocation2 + $0x30] sm:$0xff]
    %v93 = vld [vmem:[#allocation2 + $0x38] sm:$0xff]
    %v94 = vld [vmem:[#allocation2 + $0x40] sm:$0xff]
    %v95 = vld [vmem:[#allocation2 + $0x48] sm:$0xff]
    %v96 = vld [vmem:[#allocation2 + $0x50] sm:$0xff]
    %v97 = vld [vmem:[#allocation2 + $0x58] sm:$0xff]
    %v98 = vld [vmem:[#allocation2 + $0x60] sm:$0xff]
    %v99 = vld [vmem:[#allocation2 + $0x68] sm:$0xff]
    %v100 = vld [vmem:[#allocation2 + $0x70] sm:$0xff]
    %v101 = vld [vmem:[#allocation2 + $0x78] sm:$0xff]
    %v102 = vld [vmem:[#allocation2 + $0x80] sm:$0xff]
    %v103 = vld [vmem:[#allocation2 + $0x88] sm:$0xff]
    %v104 = vld [vmem:[#allocation2 + $0x90] sm:$0xff]
    %v105 = vld [vmem:[#allocation2 + $0x98] sm:$0xff]
    %v106 = vld [vmem:[#allocation2 + $0xa0] sm:$0xff]
    %v107 = vld [vmem:[#allocation2 + $0xa8] sm:$0xff]
    %v108 = vld [vmem:[#allocation2 + $0xb0] sm:$0xff]
    %v109 = vld [vmem:[#allocation2 + $0xb8] sm:$0xff]
    %v110 = vld [vmem:[#allocation4] sm:$0xff]
    %v111 = vld [vmem:[#allocation4 + $0x8] sm:$0xff]
    %v112 = vld [vmem:[#allocation4 + $0x10] sm:$0xff]
    %v113 = vld [vmem:[#allocation4 + $0x18] sm:$0xff]
    %v114 = vld [vmem:[#allocation4 + $0x20] sm:$0xff]
    %v115 = vld [vmem:[#allocation4 + $0x28] sm:$0xff]
    %v116 = vld [vmem:[#allocation4 + $0x30] sm:$0xff]
    %v117 = vld [vmem:[#allocation4 + $0x38] sm:$0xff]
    %v118 = vld [vmem:[#allocation6] sm:$0xff]
    %v119 = vld [vmem:[#allocation6 + $0x8] sm:$0x1f]
    %v120 = vld [vmem:[#allocation7] sm:$0xff]
    %v121 = vld [vmem:[#allocation7 + $0x8] sm:$0xff]
    %v122 = vld [vmem:[#allocation7 + $0x10] sm:$0xff]
    %v123 = vld [vmem:[#allocation7 + $0x18] sm:$0xff]
    %v124 = vld [vmem:[#allocation7 + $0x20] sm:$0xff]
    %v125 = vld [vmem:[#allocation7 + $0x28] sm:$0xff]
    %v126 = vld [vmem:[#allocation7 + $0x30] sm:$0xff]
    %v127 = vld [vmem:[#allocation7 + $0x38] sm:$0xff]
    %v128 = vld [vmem:[#allocation7 + $0x40] sm:$0xff]
    %v129 = vld [vmem:[#allocation7 + $0x48] sm:$0xff]
    %v130 = vld [vmem:[#allocation7 + $0x50] sm:$0xff]
    %v131 = vld [vmem:[#allocation7 + $0x58] sm:$0xff]
    %v132 = vld [vmem:[#allocation7 + $0x60] sm:$0xff]
    %v133 = vld [vmem:[#allocation7 + $0x68] sm:$0xff]
    %v134 = vld [vmem:[#allocation7 + $0x70] sm:$0xff]
    %v135 = vld [vmem:[#allocation7 + $0x78] sm:$0xff]
    %v136 = vld [vmem:[#allocation7 + $0x80] sm:$0xf]
    %vm137 = vcmask 261120
    %v138 = vsel %vm137, %v78, 0.0
    %139 = vadd.xlane.f32.xlu0 %v138
    %v140 = vpop.xlane.xlu0 %139
    %v141 = vsel %vm137, %v79, 0.0
    %142 = vadd.xlane.f32.xlu0 %v141
    %v143 = vpop.xlane.xlu0 %142
    %v144 = vsel %vm137, %v80, 0.0
    %145 = vadd.xlane.f32.xlu0 %v144
    %v146 = vpop.xlane.xlu0 %145
    %v147 = vsel %vm137, %v81, 0.0
    %148 = vadd.xlane.f32.xlu0 %v147
    %v149 = vpop.xlane.xlu0 %148
    %v150 = vrcp.pop 32.0
    %v151 = vmul.f32 %v140, %v150
    %v152 = vmul.f32 %v143, %v150
    %v153 = vmul.f32 %v146, %v150
    %v154 = vmul.f32 %v149, %v150
    %v155 = vsub.f32 %v78, %v151
    %v156 = vsub.f32 %v79, %v152
    %v157 = vsub.f32 %v80, %v153
    %v158 = vsub.f32 %v81, %v154
    %v159 = vmul.f32 %v155, %v155
    %v160 = vmul.f32 %v156, %v156
    %v161 = vmul.f32 %v157, %v157
    %v162 = vmul.f32 %v158, %v158
    %v163 = vsel %vm137, %v159, 0.0
    %164 = vadd.xlane.f32.xlu0 %v163
    %v165 = vpop.xlane.xlu0 %164
    %v166 = vsel %vm137, %v160, 0.0
    %167 = vadd.xlane.f32.xlu0 %v166
    %v168 = vpop.xlane.xlu0 %167
    %v169 = vsel %vm137, %v161, 0.0
    %170 = vadd.xlane.f32.xlu0 %v169
    %v171 = vpop.xlane.xlu0 %170
    %v172 = vsel %vm137, %v162, 0.0
    %173 = vadd.xlane.f32.xlu0 %v172
    %v174 = vpop.xlane.xlu0 %173
    %v175 = vmul.f32 %v165, %v150
    %v176 = vmul.f32 %v168, %v150
    %v177 = vmul.f32 %v171, %v150
    %v178 = vmul.f32 %v174, %v150
    %v179 = vadd.f32 %v175, 1e-05
    %v180 = vadd.f32 %v176, 1e-05
    %v181 = vadd.f32 %v177, 1e-05
    %v182 = vadd.f32 %v178, 1e-05
    %v183 = vrsqrt.pop %v179
    %v184 = vrsqrt.pop %v180
    %v185 = vrsqrt.pop %v181
    %v186 = vrsqrt.pop %v182
    %v187 = vmul.f32 %v155, %v183
    %v188 = vmul.f32 %v156, %v184
    %v189 = vmul.f32 %v157, %v185
    %v190 = vmul.f32 %v158, %v186
    %v191 = vlaneseq
    %v192 = vshrl.u32 %v191, 7
    %v193 = vsub.s32 0, %v192
    %v194 = vrot.slane %v118, %v193
    %v195 = vmul.f32 %v187, %v194
    %v196 = vmul.f32 %v188, %v194
    %v197 = vmul.f32 %v189, %v194
    %v198 = vmul.f32 %v190, %v194
    %v199 = vlaneseq
    %v200 = vshrl.u32 %v199, 7
    %v201 = vsub.s32 1, %v200
    %v202 = vrot.slane %v118, %v201
    %v203 = vadd.f32 %v195, %v202
    %v204 = vadd.f32 %v196, %v202
    %v205 = vadd.f32 %v197, %v202
    %v206 = vadd.f32 %v198, %v202
    %v207 = vlaneseq
    %v208 = vshrl.u32 %v207, 7
    %v209 = vsub.s32 2, %v208
    %v210 = vrot.slane %v118, %v209
    %v212 = vsel %vm137, %v203, 0
    %v215 = vsel %vm137, %v204, 0
    %v218 = vsel %vm137, %v205, 0
    %v221 = vsel %vm137, %v206, 0
    %223 = vmatprep.subr.mxu0 0.0
    %224 = vmatpush1.msra.mxu0 0.0
    %225 = vmatprep.subr.mxu0 0.0
    %226 = vmatpush1.msra.mxu0 0.0
    %227 = vmatprep.subr.mxu0 0.0
    %228 = vmatpush1.msra.mxu0 0.0
    %229 = vmatprep.subr.mxu0 0.0
    %230 = vmatpush1.msra.mxu0 0.0
    %231 = vmatprep.subr.mxu0 0.0
    %232 = vmatpush1.msra.mxu0 0.0
    %233 = vmatprep.subr.mxu0 0.0
    %234 = vmatpush1.msra.mxu0 0.0
    %235 = vmatprep.subr.mxu0 0.0
    %236 = vmatpush1.msra.mxu0 0.0
    %237 = vmatprep.subr.mxu0 0.0
    %238 = vmatpush1.msra.mxu0 0.0
    %239 = vmatprep.subr.mxu0 0.0
    %240 = vmatpush1.msra.mxu0 0.0
    %241 = vmatprep.subr.mxu0 0.0
    %242 = vmatpush1.msra.mxu0 0.0
    %243 = vmatprep.subr.mxu0 0.0
    %244 = vmatpush1.msra.mxu0 0.0
    %245 = vmatprep.subr.mxu0 0.0
    %246 = vmatpush1.msra.mxu0 0.0
    %247 = vmatprep.subr.mxu0 0.0
    %248 = vmatpush1.msra.mxu0 %v104
    %249 = vmatprep.subr.mxu0 0.0
    %250 = vmatpush1.msra.mxu0 %v98
    %251 = vmatprep.subr.mxu0 0.0
    %252 = vmatpush1.msra.mxu0 %v92
    %253 = vmatprep.subr.mxu0 0.0
    %254 = vmatpush1.msra.mxu0 %v86
    %255 = vmatprep.subr.mxu0 0.0
    %256 = vmatpush2.msra.mxu0 0.0
    %257 = vmatprep.subr.mxu0 0.0
    %258 = vmatpush2.msra.mxu0 0.0
    %259 = vmatprep.subr.mxu0 0.0
    %260 = vmatpush2.msra.mxu0 0.0
    %261 = vmatprep.subr.mxu0 0.0
    %262 = vmatpush2.msra.mxu0 0.0
    %263 = vmatprep.subr.mxu0 0.0
    %264 = vmatpush2.msra.mxu0 0.0
    %265 = vmatprep.subr.mxu0 0.0
    %266 = vmatpush2.msra.mxu0 0.0
    %267 = vmatprep.subr.mxu0 0.0
    %268 = vmatpush2.msra.mxu0 0.0
    %269 = vmatprep.subr.mxu0 0.0
    %270 = vmatpush2.msra.mxu0 0.0
    %271 = vmatprep.subr.mxu0 0.0
    %272 = vmatpush2.msra.mxu0 0.0
    %273 = vmatprep.subr.mxu0 0.0
    %274 = vmatpush2.msra.mxu0 0.0
    %275 = vmatprep.subr.mxu0 0.0
    %276 = vmatpush2.msra.mxu0 0.0
    %277 = vmatprep.subr.mxu0 0.0
    %278 = vmatpush2.msra.mxu0 0.0
    %279 = vmatprep.subr.mxu0 0.0
    %280 = vmatpush2.msra.mxu0 0.0
    %281 = vmatprep.subr.mxu0 0.0
    %282 = vmatpush2.msra.mxu0 0.0
    %283 = vmatprep.subr.mxu0 0.0
    %284 = vmatpush2.msra.mxu0 0.0
    %285 = vmatprep.subr.mxu0 0.0
    %286 = vmatpush2.msra.mxu0 0.0
    %287 = vmatprep.mubr.f32.mxu0 0.0
    %288 = vmatmul.mubr.f32.gmra.mxu0 %v212
    %v289 = vpop.f32.mrf.mxu0
    %v290 = vadd.f32 %v210, %v289
    %v291 = vpop.f32.mrf.mxu0
    %292 = vmatprep.mubr.f32.mxu0 0.0
    %293 = vmatmul.mubr.f32.gmra.mxu0 %v215
    %v294 = vpop.f32.mrf.mxu0
    %v295 = vadd.f32 %v210, %v294
    %v296 = vpop.f32.mrf.mxu0
    %297 = vmatprep.mubr.f32.mxu0 0.0
    %298 = vmatmul.mubr.f32.gmra.mxu0 %v218
    %v299 = vpop.f32.mrf.mxu0
    %v300 = vadd.f32 %v210, %v299
    %v301 = vpop.f32.mrf.mxu0
    %302 = vmatprep.mubr.f32.mxu0 0.0
    %303 = vmatmul.mubr.f32.gmra.mxu0 %v221
    %v304 = vpop.f32.mrf.mxu0
    %v305 = vadd.f32 %v210, %v304
    %v306 = vpop.f32.mrf.mxu0
    %307 = vdwg.mxu0
    %312 = vrot.lane.b32.xlu0 %v290, 96
    %v313 = vpop.permute.xlu0 %312
    %314 = vrot.lane.b32.xlu0 %v295, 96
    %v315 = vpop.permute.xlu0 %314
    %316 = vrot.lane.b32.xlu0 %v300, 96
    %v317 = vpop.permute.xlu0 %316
    %318 = vrot.lane.b32.xlu0 %v305, 96
    %v319 = vpop.permute.xlu0 %318
    %324 = vxpose.xlu0.b32.start [1/16] %v313, 128
    %325 = vxpose.xlu0.b32.cont [2/16] %v315, 128
    %326 = vxpose.xlu0.b32.cont [3/16] %v317, 128
    %327 = vxpose.xlu0.b32.cont [4/16] %v319, 128
    %328 = vxpose.xlu0.b32.cont [5/16] 0.0, 128
    %329 = vxpose.xlu0.b32.cont [6/16] 0.0, 128
    %330 = vxpose.xlu0.b32.cont [7/16] 0.0, 128
    %331 = vxpose.xlu0.b32.cont [8/16] 0.0, 128
    %332 = vxpose.xlu0.b32.cont [9/16] 0.0, 128
    %333 = vxpose.xlu0.b32.cont [10/16] 0.0, 128
    %334 = vxpose.xlu0.b32.cont [11/16] 0.0, 128
    %335 = vxpose.xlu0.b32.cont [12/16] 0.0, 128
    %336 = vxpose.xlu0.b32.cont [13/16] 0.0, 128
    %337 = vxpose.xlu0.b32.cont [14/16] 0.0, 128
    %338 = vxpose.xlu0.b32.cont [15/16] 0.0, 128
    %339 = vxpose.xlu0.b32.end [16/16] 0.0, 128
    %v340 = vpop.trf.xlu0
    %v341 = vpop.trf.xlu0
    %v342 = vpop.trf.xlu0
    %v343 = vpop.trf.xlu0
    %v344 = vpop.trf.xlu0
    %v345 = vpop.trf.xlu0
    %v346 = vpop.trf.xlu0
    %v347 = vpop.trf.xlu0
    %v348 = vpop.trf.xlu0
    %v349 = vpop.trf.xlu0
    %v350 = vpop.trf.xlu0
    %v351 = vpop.trf.xlu0
    %v352 = vpop.trf.xlu0
    %v353 = vpop.trf.xlu0
    %v354 = vpop.trf.xlu0
    %v355 = vpop.trf.xlu0
    %v357 = vsel %vm137, %v340, 0
    %v360 = vsel %vm137, %v341, 0
    %v363 = vsel %vm137, %v342, 0
    %v366 = vsel %vm137, %v343, 0
    %368 = vmatprep.subr.mxu0 0.0
    %369 = vmatpush1.msra.mxu0 0.0
    %370 = vmatprep.subr.mxu0 0.0
    %371 = vmatpush1.msra.mxu0 0.0
    %372 = vmatprep.subr.mxu0 0.0
    %373 = vmatpush1.msra.mxu0 0.0
    %374 = vmatprep.subr.mxu0 0.0
    %375 = vmatpush1.msra.mxu0 0.0
    %376 = vmatprep.subr.mxu0 0.0
    %377 = vmatpush1.msra.mxu0 0.0
    %378 = vmatprep.subr.mxu0 0.0
    %379 = vmatpush1.msra.mxu0 0.0
    %380 = vmatprep.subr.mxu0 0.0
    %381 = vmatpush1.msra.mxu0 0.0
    %382 = vmatprep.subr.mxu0 0.0
    %383 = vmatpush1.msra.mxu0 0.0
    %384 = vmatprep.subr.mxu0 0.0
    %385 = vmatpush1.msra.mxu0 0.0
    %386 = vmatprep.subr.mxu0 0.0
    %387 = vmatpush1.msra.mxu0 0.0
    %388 = vmatprep.subr.mxu0 0.0
    %389 = vmatpush1.msra.mxu0 0.0
    %390 = vmatprep.subr.mxu0 0.0
    %391 = vmatpush1.msra.mxu0 0.0
    %392 = vmatprep.subr.mxu0 0.0
    %393 = vmatpush1.msra.mxu0 %v131
    %394 = vmatprep.subr.mxu0 0.0
    %395 = vmatpush1.msra.mxu0 %v130
    %396 = vmatprep.subr.mxu0 0.0
    %397 = vmatpush1.msra.mxu0 %v129
    %398 = vmatprep.subr.mxu0 0.0
    %399 = vmatpush1.msra.mxu0 %v128
    %400 = vmatprep.subr.mxu0 0.0
    %401 = vmatpush2.msra.mxu0 0.0
    %402 = vmatprep.subr.mxu0 0.0
    %403 = vmatpush2.msra.mxu0 0.0
    %404 = vmatprep.subr.mxu0 0.0
    %405 = vmatpush2.msra.mxu0 0.0
    %406 = vmatprep.subr.mxu0 0.0
    %407 = vmatpush2.msra.mxu0 0.0
    %408 = vmatprep.subr.mxu0 0.0
    %409 = vmatpush2.msra.mxu0 0.0
    %410 = vmatprep.subr.mxu0 0.0
    %411 = vmatpush2.msra.mxu0 0.0
    %412 = vmatprep.subr.mxu0 0.0
    %413 = vmatpush2.msra.mxu0 0.0
    %414 = vmatprep.subr.mxu0 0.0
    %415 = vmatpush2.msra.mxu0 0.0
    %416 = vmatprep.subr.mxu0 0.0
    %417 = vmatpush2.msra.mxu0 0.0
    %418 = vmatprep.subr.mxu0 0.0
    %419 = vmatpush2.msra.mxu0 0.0
    %420 = vmatprep.subr.mxu0 0.0
    %421 = vmatpush2.msra.mxu0 0.0
    %422 = vmatprep.subr.mxu0 0.0
    %423 = vmatpush2.msra.mxu0 0.0
    %424 = vmatprep.subr.mxu0 0.0
    %425 = vmatpush2.msra.mxu0 0.0
    %426 = vmatprep.subr.mxu0 0.0
    %427 = vmatpush2.msra.mxu0 0.0
    %428 = vmatprep.subr.mxu0 0.0
    %429 = vmatpush2.msra.mxu0 0.0
    %430 = vmatprep.subr.mxu0 0.0
    %431 = vmatpush2.msra.mxu0 0.0
    %432 = vmatprep.mubr.f32.mxu0 0.0
    %433 = vmatmul.mubr.f32.gmra.mxu0 %v357
    %v434 = vpop.f32.mrf.mxu0
    %v435 = vadd.f32 0.0, %v434
    %v436 = vpop.f32.mrf.mxu0
    %437 = vmatprep.mubr.f32.mxu0 0.0
    %438 = vmatmul.mubr.f32.gmra.mxu0 %v360
    %v439 = vpop.f32.mrf.mxu0
    %v440 = vadd.f32 0.0, %v439
    %v441 = vpop.f32.mrf.mxu0
    %442 = vmatprep.mubr.f32.mxu0 0.0
    %443 = vmatmul.mubr.f32.gmra.mxu0 %v363
    %v444 = vpop.f32.mrf.mxu0
    %v445 = vadd.f32 0.0, %v444
    %v446 = vpop.f32.mrf.mxu0
    %447 = vmatprep.mubr.f32.mxu0 0.0
    %448 = vmatmul.mubr.f32.gmra.mxu0 %v366
    %v449 = vpop.f32.mrf.mxu0
    %v450 = vadd.f32 0.0, %v449
    %v451 = vpop.f32.mrf.mxu0
    %452 = vdwg.mxu0
    %v453 = vmul.f32 %v435, %v132
    %v454 = vmul.f32 %v440, %v133
    %v455 = vmul.f32 %v445, %v134
    %v456 = vmul.f32 %v450, %v135
    %457 = vrot.lane.b32.xlu0 %v290, 64
    %v458 = vpop.permute.xlu0 %457
    %459 = vrot.lane.b32.xlu0 %v295, 64
    %v460 = vpop.permute.xlu0 %459
    %461 = vrot.lane.b32.xlu0 %v300, 64
    %v462 = vpop.permute.xlu0 %461
    %463 = vrot.lane.b32.xlu0 %v305, 64
    %v464 = vpop.permute.xlu0 %463
    %469 = vxpose.xlu0.b32.start [1/16] %v458, 128
    %470 = vxpose.xlu0.b32.cont [2/16] %v460, 128
    %471 = vxpose.xlu0.b32.cont [3/16] %v462, 128
    %472 = vxpose.xlu0.b32.cont [4/16] %v464, 128
    %473 = vxpose.xlu0.b32.cont [5/16] 0.0, 128
    %474 = vxpose.xlu0.b32.cont [6/16] 0.0, 128
    %475 = vxpose.xlu0.b32.cont [7/16] 0.0, 128
    %476 = vxpose.xlu0.b32.cont [8/16] 0.0, 128
    %477 = vxpose.xlu0.b32.cont [9/16] 0.0, 128
    %478 = vxpose.xlu0.b32.cont [10/16] 0.0, 128
    %479 = vxpose.xlu0.b32.cont [11/16] 0.0, 128
    %480 = vxpose.xlu0.b32.cont [12/16] 0.0, 128
    %481 = vxpose.xlu0.b32.cont [13/16] 0.0, 128
    %482 = vxpose.xlu0.b32.cont [14/16] 0.0, 128
    %483 = vxpose.xlu0.b32.cont [15/16] 0.0, 128
    %484 = vxpose.xlu0.b32.end [16/16] 0.0, 128
    %v485 = vpop.trf.xlu0
    %v486 = vpop.trf.xlu0
    %v487 = vpop.trf.xlu0
    %v488 = vpop.trf.xlu0
    %v489 = vpop.trf.xlu0
    %v490 = vpop.trf.xlu0
    %v491 = vpop.trf.xlu0
    %v492 = vpop.trf.xlu0
    %v493 = vpop.trf.xlu0
    %v494 = vpop.trf.xlu0
    %v495 = vpop.trf.xlu0
    %v496 = vpop.trf.xlu0
    %v497 = vpop.trf.xlu0
    %v498 = vpop.trf.xlu0
    %v499 = vpop.trf.xlu0
    %v500 = vpop.trf.xlu0
    %v502 = vsel %vm137, %v485, 0
    %v505 = vsel %vm137, %v486, 0
    %v508 = vsel %vm137, %v487, 0
    %v511 = vsel %vm137, %v488, 0
    %513 = vmatprep.subr.mxu0 0.0
    %514 = vmatpush1.msra.mxu0 0.0
    %515 = vmatprep.subr.mxu0 0.0
    %516 = vmatpush1.msra.mxu0 0.0
    %517 = vmatprep.subr.mxu0 0.0
    %518 = vmatpush1.msra.mxu0 0.0
    %519 = vmatprep.subr.mxu0 0.0
    %520 = vmatpush1.msra.mxu0 0.0
    %521 = vmatprep.subr.mxu0 0.0
    %522 = vmatpush1.msra.mxu0 0.0
    %523 = vmatprep.subr.mxu0 0.0
    %524 = vmatpush1.msra.mxu0 0.0
    %525 = vmatprep.subr.mxu0 0.0
    %526 = vmatpush1.msra.mxu0 0.0
    %527 = vmatprep.subr.mxu0 0.0
    %528 = vmatpush1.msra.mxu0 0.0
    %529 = vmatprep.subr.mxu0 0.0
    %530 = vmatpush1.msra.mxu0 0.0
    %531 = vmatprep.subr.mxu0 0.0
    %532 = vmatpush1.msra.mxu0 0.0
    %533 = vmatprep.subr.mxu0 0.0
    %534 = vmatpush1.msra.mxu0 0.0
    %535 = vmatprep.subr.mxu0 0.0
    %536 = vmatpush1.msra.mxu0 0.0
    %537 = vmatprep.subr.mxu0 0.0
    %538 = vmatpush1.msra.mxu0 %v131
    %539 = vmatprep.subr.mxu0 0.0
    %540 = vmatpush1.msra.mxu0 %v130
    %541 = vmatprep.subr.mxu0 0.0
    %542 = vmatpush1.msra.mxu0 %v129
    %543 = vmatprep.subr.mxu0 0.0
    %544 = vmatpush1.msra.mxu0 %v128
    %545 = vmatprep.subr.mxu0 0.0
    %546 = vmatpush2.msra.mxu0 0.0
    %547 = vmatprep.subr.mxu0 0.0
    %548 = vmatpush2.msra.mxu0 0.0
    %549 = vmatprep.subr.mxu0 0.0
    %550 = vmatpush2.msra.mxu0 0.0
    %551 = vmatprep.subr.mxu0 0.0
    %552 = vmatpush2.msra.mxu0 0.0
    %553 = vmatprep.subr.mxu0 0.0
    %554 = vmatpush2.msra.mxu0 0.0
    %555 = vmatprep.subr.mxu0 0.0
    %556 = vmatpush2.msra.mxu0 0.0
    %557 = vmatprep.subr.mxu0 0.0
    %558 = vmatpush2.msra.mxu0 0.0
    %559 = vmatprep.subr.mxu0 0.0
    %560 = vmatpush2.msra.mxu0 0.0
    %561 = vmatprep.subr.mxu0 0.0
    %562 = vmatpush2.msra.mxu0 0.0
    %563 = vmatprep.subr.mxu0 0.0
    %564 = vmatpush2.msra.mxu0 0.0
    %565 = vmatprep.subr.mxu0 0.0
    %566 = vmatpush2.msra.mxu0 0.0
    %567 = vmatprep.subr.mxu0 0.0
    %568 = vmatpush2.msra.mxu0 0.0
    %569 = vmatprep.subr.mxu0 0.0
    %570 = vmatpush2.msra.mxu0 0.0
    %571 = vmatprep.subr.mxu0 0.0
    %572 = vmatpush2.msra.mxu0 0.0
    %573 = vmatprep.subr.mxu0 0.0
    %574 = vmatpush2.msra.mxu0 0.0
    %575 = vmatprep.subr.mxu0 0.0
    %576 = vmatpush2.msra.mxu0 0.0
    %577 = vmatprep.mubr.f32.mxu0 0.0
    %578 = vmatmul.mubr.f32.gmra.mxu0 %v502
    %v579 = vpop.f32.mrf.mxu0
    %v580 = vadd.f32 0.0, %v579
    %v581 = vpop.f32.mrf.mxu0
    %582 = vmatprep.mubr.f32.mxu0 0.0
    %583 = vmatmul.mubr.f32.gmra.mxu0 %v505
    %v584 = vpop.f32.mrf.mxu0
    %v585 = vadd.f32 0.0, %v584
    %v586 = vpop.f32.mrf.mxu0
    %587 = vmatprep.mubr.f32.mxu0 0.0
    %588 = vmatmul.mubr.f32.gmra.mxu0 %v508
    %v589 = vpop.f32.mrf.mxu0
    %v590 = vadd.f32 0.0, %v589
    %v591 = vpop.f32.mrf.mxu0
    %592 = vmatprep.mubr.f32.mxu0 0.0
    %593 = vmatmul.mubr.f32.gmra.mxu0 %v511
    %v594 = vpop.f32.mrf.mxu0
    %v595 = vadd.f32 0.0, %v594
    %v596 = vpop.f32.mrf.mxu0
    %597 = vdwg.mxu0
    %v598 = vmul.f32 %v580, %v132
    %v599 = vmul.f32 %v585, %v133
    %v600 = vmul.f32 %v590, %v134
    %v601 = vmul.f32 %v595, %v135
    %v602 = vsel %vm137, %v290, 0
    %v604 = vsel %vm137, %v295, 0
    %v606 = vsel %vm137, %v300, 0
    %v608 = vsel %vm137, %v305, 0
    %610 = vmatprep.subr.mxu0 0.0
    %611 = vmatpush1.msra.mxu0 0.0
    %612 = vmatprep.subr.mxu0 0.0
    %613 = vmatpush1.msra.mxu0 0.0
    %614 = vmatprep.subr.mxu0 0.0
    %615 = vmatpush1.msra.mxu0 0.0
    %616 = vmatprep.subr.mxu0 0.0
    %617 = vmatpush1.msra.mxu0 0.0
    %618 = vmatprep.subr.mxu0 0.0
    %619 = vmatpush1.msra.mxu0 0.0
    %620 = vmatprep.subr.mxu0 0.0
    %621 = vmatpush1.msra.mxu0 0.0
    %622 = vmatprep.subr.mxu0 0.0
    %623 = vmatpush1.msra.mxu0 0.0
    %624 = vmatprep.subr.mxu0 0.0
    %625 = vmatpush1.msra.mxu0 0.0
    %626 = vmatprep.subr.mxu0 0.0
    %627 = vmatpush1.msra.mxu0 0.0
    %628 = vmatprep.subr.mxu0 0.0
    %629 = vmatpush1.msra.mxu0 0.0
    %630 = vmatprep.subr.mxu0 0.0
    %631 = vmatpush1.msra.mxu0 0.0
    %632 = vmatprep.subr.mxu0 0.0
    %633 = vmatpush1.msra.mxu0 0.0
    %634 = vmatprep.subr.mxu0 0.0
    %635 = vmatpush1.msra.mxu0 %v456
    %636 = vmatprep.subr.mxu0 0.0
    %637 = vmatpush1.msra.mxu0 %v455
    %638 = vmatprep.subr.mxu0 0.0
    %639 = vmatpush1.msra.mxu0 %v454
    %640 = vmatprep.subr.mxu0 0.0
    %641 = vmatpush1.msra.mxu0 %v453
    %642 = vmatprep.subr.mxu0 0.0
    %643 = vmatpush2.msra.mxu0 0.0
    %644 = vmatprep.subr.mxu0 0.0
    %645 = vmatpush2.msra.mxu0 0.0
    %646 = vmatprep.subr.mxu0 0.0
    %647 = vmatpush2.msra.mxu0 0.0
    %648 = vmatprep.subr.mxu0 0.0
    %649 = vmatpush2.msra.mxu0 0.0
    %650 = vmatprep.subr.mxu0 0.0
    %651 = vmatpush2.msra.mxu0 0.0
    %652 = vmatprep.subr.mxu0 0.0
    %653 = vmatpush2.msra.mxu0 0.0
    %654 = vmatprep.subr.mxu0 0.0
    %655 = vmatpush2.msra.mxu0 0.0
    %656 = vmatprep.subr.mxu0 0.0
    %657 = vmatpush2.msra.mxu0 0.0
    %658 = vmatprep.subr.mxu0 0.0
    %659 = vmatpush2.msra.mxu0 0.0
    %660 = vmatprep.subr.mxu0 0.0
    %661 = vmatpush2.msra.mxu0 0.0
    %662 = vmatprep.subr.mxu0 0.0
    %663 = vmatpush2.msra.mxu0 0.0
    %664 = vmatprep.subr.mxu0 0.0
    %665 = vmatpush2.msra.mxu0 0.0
    %666 = vmatprep.subr.mxu0 0.0
    %667 = vmatpush2.msra.mxu0 0.0
    %668 = vmatprep.subr.mxu0 0.0
    %669 = vmatpush2.msra.mxu0 0.0
    %670 = vmatprep.subr.mxu0 0.0
    %671 = vmatpush2.msra.mxu0 0.0
    %672 = vmatprep.subr.mxu0 0.0
    %673 = vmatpush2.msra.mxu0 0.0
    %674 = vmatprep.mubr.f32.mxu0 0.0
    %675 = vmatmul.mubr.f32.gmra.mxu0 %v602
    %v676 = vpop.f32.mrf.mxu0
    %v677 = vadd.f32 %v120, %v676
    %v678 = vpop.f32.mrf.mxu0
    %679 = vmatprep.mubr.f32.mxu0 0.0
    %680 = vmatmul.mubr.f32.gmra.mxu0 %v604
    %v681 = vpop.f32.mrf.mxu0
    %v682 = vadd.f32 %v121, %v681
    %v683 = vpop.f32.mrf.mxu0
    %684 = vmatprep.mubr.f32.mxu0 0.0
    %685 = vmatmul.mubr.f32.gmra.mxu0 %v606
    %v686 = vpop.f32.mrf.mxu0
    %v687 = vadd.f32 %v122, %v686
    %v688 = vpop.f32.mrf.mxu0
    %689 = vmatprep.mubr.f32.mxu0 0.0
    %690 = vmatmul.mubr.f32.gmra.mxu0 %v608
    %v691 = vpop.f32.mrf.mxu0
    %v692 = vadd.f32 %v123, %v691
    %v693 = vpop.f32.mrf.mxu0
    %694 = vdwg.mxu0
    %v695 = vsel %vm137, %v677, -inf
    %696 = vmax.xlane.f32.xlu0 %v695
    %v697 = vpop.xlane.xlu0 %696
    %v698 = vsel %vm137, %v682, -inf
    %699 = vmax.xlane.f32.xlu0 %v698
    %v700 = vpop.xlane.xlu0 %699
    %v701 = vsel %vm137, %v687, -inf
    %702 = vmax.xlane.f32.xlu0 %v701
    %v703 = vpop.xlane.xlu0 %702
    %v704 = vsel %vm137, %v692, -inf
    %705 = vmax.xlane.f32.xlu0 %v704
    %v706 = vpop.xlane.xlu0 %705
    %v707 = vlaneseq
    %v708 = vshrl.u32 %v707, 7
    %v709 = vsub.s32 0, %v708
    %v710 = vrot.slane %v136, %v709
    %v711 = vmul.f32 %v697, %v710
    %v712 = vmul.f32 %v700, %v710
    %v713 = vmul.f32 %v703, %v710
    %v714 = vmul.f32 %v706, %v710
    %vm715 = vcmask 523520
    %v716 = vsel %vm715, %v677, -inf
    %717 = vmax.xlane.f32.xlu0 %v716
    %v718 = vpop.xlane.xlu0 %717
    %v719 = vsel %vm715, %v682, -inf
    %720 = vmax.xlane.f32.xlu0 %v719
    %v721 = vpop.xlane.xlu0 %720
    %v722 = vsel %vm715, %v687, -inf
    %723 = vmax.xlane.f32.xlu0 %v722
    %v724 = vpop.xlane.xlu0 %723
    %v725 = vsel %vm715, %v692, -inf
    %726 = vmax.xlane.f32.xlu0 %v725
    %v727 = vpop.xlane.xlu0 %726
    %v728 = vlaneseq
    %v729 = vshrl.u32 %v728, 7
    %v730 = vsub.s32 1, %v729
    %v731 = vrot.slane %v136, %v730
    %v732 = vmul.f32 %v718, %v731
    %v733 = vmul.f32 %v721, %v731
    %v734 = vmul.f32 %v724, %v731
    %v735 = vmul.f32 %v727, %v731
    %v736 = vadd.f32 %v711, %v732
    %v737 = vadd.f32 %v712, %v733
    %v738 = vadd.f32 %v713, %v734
    %v739 = vadd.f32 %v714, %v735
    %vm740 = vcmask 785920
    %v741 = vsel %vm740, %v677, -inf
    %742 = vmax.xlane.f32.xlu0 %v741
    %v743 = vpop.xlane.xlu0 %742
    %v744 = vsel %vm740, %v682, -inf
    %745 = vmax.xlane.f32.xlu0 %v744
    %v746 = vpop.xlane.xlu0 %745
    %v747 = vsel %vm740, %v687, -inf
    %748 = vmax.xlane.f32.xlu0 %v747
    %v749 = vpop.xlane.xlu0 %748
    %v750 = vsel %vm740, %v692, -inf
    %751 = vmax.xlane.f32.xlu0 %v750
    %v752 = vpop.xlane.xlu0 %751
    %v753 = vlaneseq
    %v754 = vshrl.u32 %v753, 7
    %v755 = vsub.s32 2, %v754
    %v756 = vrot.slane %v136, %v755
    %v757 = vmul.f32 %v743, %v756
    %v758 = vmul.f32 %v746, %v756
    %v759 = vmul.f32 %v749, %v756
    %v760 = vmul.f32 %v752, %v756
    %v761 = vadd.f32 %v736, %v757
    %v762 = vadd.f32 %v737, %v758
    %v763 = vadd.f32 %v738, %v759
    %v764 = vadd.f32 %v739, %v760
    %vm765 = vcmask 1048320
    %v766 = vsel %vm765, %v677, -inf
    %767 = vmax.xlane.f32.xlu0 %v766
    %v768 = vpop.xlane.xlu0 %767
    %v769 = vsel %vm765, %v682, -inf
    %770 = vmax.xlane.f32.xlu0 %v769
    %v771 = vpop.xlane.xlu0 %770
    %v772 = vsel %vm765, %v687, -inf
    %773 = vmax.xlane.f32.xlu0 %v772
    %v774 = vpop.xlane.xlu0 %773
    %v775 = vsel %vm765, %v692, -inf
    %776 = vmax.xlane.f32.xlu0 %v775
    %v777 = vpop.xlane.xlu0 %776
    %v778 = vlaneseq
    %v779 = vshrl.u32 %v778, 7
    %v780 = vsub.s32 3, %v779
    %v781 = vrot.slane %v136, %v780
    %v782 = vmul.f32 %v768, %v781
    %v783 = vmul.f32 %v771, %v781
    %v784 = vmul.f32 %v774, %v781
    %v785 = vmul.f32 %v777, %v781
    %v786 = vadd.f32 %v761, %v782
    %v787 = vadd.f32 %v762, %v783
    %v788 = vadd.f32 %v763, %v784
    %v789 = vadd.f32 %v764, %v785
    %v790 = vsub.f32 %v677, %v786
    %v791 = vsub.f32 %v682, %v787
    %v792 = vsub.f32 %v687, %v788
    %v793 = vsub.f32 %v692, %v789
    %v794 = vmul.f32 %v790, 1.442695
    %v795 = vpow.pop %v794
    %v796 = vmul.f32 %v791, 1.442695
    %v797 = vpow.pop %v796
    %v798 = vmul.f32 %v792, 1.442695
    %v799 = vpow.pop %v798
    %v800 = vmul.f32 %v793, 1.442695
    %v801 = vpow.pop %v800
    %802 = vmatprep.subr.mxu0 0.0
    %803 = vmatpush1.xpose.msra.mxu0 0.0
    %804 = vmatprep.subr.mxu0 0.0
    %805 = vmatpush1.xpose.msra.mxu0 0.0
    %806 = vmatprep.subr.mxu0 0.0
    %807 = vmatpush1.xpose.msra.mxu0 0.0
    %808 = vmatprep.subr.mxu0 0.0
    %809 = vmatpush1.xpose.msra.mxu0 0.0
    %810 = vmatprep.subr.mxu0 0.0
    %811 = vmatpush1.xpose.msra.mxu0 0.0
    %812 = vmatprep.subr.mxu0 0.0
    %813 = vmatpush1.xpose.msra.mxu0 0.0
    %814 = vmatprep.subr.mxu0 0.0
    %815 = vmatpush1.xpose.msra.mxu0 0.0
    %816 = vmatprep.subr.mxu0 0.0
    %817 = vmatpush1.xpose.msra.mxu0 0.0
    %818 = vmatprep.subr.mxu0 0.0
    %819 = vmatpush1.xpose.msra.mxu0 0.0
    %820 = vmatprep.subr.mxu0 0.0
    %821 = vmatpush1.xpose.msra.mxu0 0.0
    %822 = vmatprep.subr.mxu0 0.0
    %823 = vmatpush1.xpose.msra.mxu0 0.0
    %824 = vmatprep.subr.mxu0 0.0
    %825 = vmatpush1.xpose.msra.mxu0 0.0
    %826 = vmatprep.subr.mxu0 0.0
    %827 = vmatpush1.xpose.msra.mxu0 0.0
    %828 = vmatprep.subr.mxu0 0.0
    %829 = vmatpush1.xpose.msra.mxu0 0.0
    %830 = vmatprep.subr.mxu0 0.0
    %831 = vmatpush1.xpose.msra.mxu0 0.0
    %832 = vmatprep.subr.mxu0 0.0
    %833 = vmatpush1.xpose.msra.mxu0 %v136
    %834 = vmatprep.subr.mxu0 0.0
    %835 = vmatpush2.xpose.msra.mxu0 0.0
    %836 = vmatprep.subr.mxu0 0.0
    %837 = vmatpush2.xpose.msra.mxu0 0.0
    %838 = vmatprep.subr.mxu0 0.0
    %839 = vmatpush2.xpose.msra.mxu0 0.0
    %840 = vmatprep.subr.mxu0 0.0
    %841 = vmatpush2.xpose.msra.mxu0 0.0
    %842 = vmatprep.subr.mxu0 0.0
    %843 = vmatpush2.xpose.msra.mxu0 0.0
    %844 = vmatprep.subr.mxu0 0.0
    %845 = vmatpush2.xpose.msra.mxu0 0.0
    %846 = vmatprep.subr.mxu0 0.0
    %847 = vmatpush2.xpose.msra.mxu0 0.0
    %848 = vmatprep.subr.mxu0 0.0
    %849 = vmatpush2.xpose.msra.mxu0 0.0
    %850 = vmatprep.subr.mxu0 0.0
    %851 = vmatpush2.xpose.msra.mxu0 0.0
    %852 = vmatprep.subr.mxu0 0.0
    %853 = vmatpush2.xpose.msra.mxu0 0.0
    %854 = vmatprep.subr.mxu0 0.0
    %855 = vmatpush2.xpose.msra.mxu0 0.0
    %856 = vmatprep.subr.mxu0 0.0
    %857 = vmatpush2.xpose.msra.mxu0 0.0
    %858 = vmatprep.subr.mxu0 0.0
    %859 = vmatpush2.xpose.msra.mxu0 0.0
    %860 = vmatprep.subr.mxu0 0.0
    %861 = vmatpush2.xpose.msra.mxu0 0.0
    %862 = vmatprep.subr.mxu0 0.0
    %863 = vmatpush2.xpose.msra.mxu0 0.0
    %864 = vmatprep.subr.mxu0 0.0
    %865 = vmatpush2.xpose.msra.mxu0 0.0
    %866 = vmatprep.mubr.f32.mxu0 0.0
    %867 = vmatmul.mubr.f32.gmra.mxu0 %v795
    %v868 = vpop.f32.mrf.mxu0
    %v869 = vadd.f32 0.0, %v868
    %v870 = vpop.f32.mrf.mxu0
    %871 = vmatprep.mubr.f32.mxu0 0.0
    %872 = vmatmul.mubr.f32.gmra.mxu0 %v797
    %v873 = vpop.f32.mrf.mxu0
    %v874 = vadd.f32 0.0, %v873
    %v875 = vpop.f32.mrf.mxu0
    %876 = vmatprep.mubr.f32.mxu0 0.0
    %877 = vmatmul.mubr.f32.gmra.mxu0 %v799
    %v878 = vpop.f32.mrf.mxu0
    %v879 = vadd.f32 0.0, %v878
    %v880 = vpop.f32.mrf.mxu0
    %881 = vmatprep.mubr.f32.mxu0 0.0
    %882 = vmatmul.mubr.f32.gmra.mxu0 %v801
    %v883 = vpop.f32.mrf.mxu0
    %v884 = vadd.f32 0.0, %v883
    %v885 = vpop.f32.mrf.mxu0
    %886 = vdwg.mxu0
    %v887 = vrcp.pop %v869
    %v888 = vrcp.pop %v874
    %v889 = vrcp.pop %v879
    %v890 = vrcp.pop %v884
    %vm891 = vcmask 31744
    %v893 = vsel %vm891, %v887, 0
    %v896 = vsel %vm891, %v888, 0
    %v899 = vsel %vm891, %v889, 0
    %v902 = vsel %vm891, %v890, 0
    %vm904 = vcmask 1043456
    %v906 = vsel %vm904, %v136, 0
    %908 = vmatprep.subr.mxu0 0.0
    %909 = vmatpush1.msra.mxu0 0.0
    %910 = vmatprep.subr.mxu0 0.0
    %911 = vmatpush1.msra.mxu0 0.0
    %912 = vmatprep.subr.mxu0 0.0
    %913 = vmatpush1.msra.mxu0 0.0
    %914 = vmatprep.subr.mxu0 0.0
    %915 = vmatpush1.msra.mxu0 0.0
    %916 = vmatprep.subr.mxu0 0.0
    %917 = vmatpush1.msra.mxu0 0.0
    %918 = vmatprep.subr.mxu0 0.0
    %919 = vmatpush1.msra.mxu0 0.0
    %920 = vmatprep.subr.mxu0 0.0
    %921 = vmatpush1.msra.mxu0 0.0
    %922 = vmatprep.subr.mxu0 0.0
    %923 = vmatpush1.msra.mxu0 0.0
    %924 = vmatprep.subr.mxu0 0.0
    %925 = vmatpush1.msra.mxu0 0.0
    %926 = vmatprep.subr.mxu0 0.0
    %927 = vmatpush1.msra.mxu0 0.0
    %928 = vmatprep.subr.mxu0 0.0
    %929 = vmatpush1.msra.mxu0 0.0
    %930 = vmatprep.subr.mxu0 0.0
    %931 = vmatpush1.msra.mxu0 0.0
    %932 = vmatprep.subr.mxu0 0.0
    %933 = vmatpush1.msra.mxu0 0.0
    %934 = vmatprep.subr.mxu0 0.0
    %935 = vmatpush1.msra.mxu0 0.0
    %936 = vmatprep.subr.mxu0 0.0
    %937 = vmatpush1.msra.mxu0 0.0
    %938 = vmatprep.subr.mxu0 0.0
    %939 = vmatpush1.msra.mxu0 %v906
    %940 = vmatprep.subr.mxu0 0.0
    %941 = vmatpush2.msra.mxu0 0.0
    %942 = vmatprep.subr.mxu0 0.0
    %943 = vmatpush2.msra.mxu0 0.0
    %944 = vmatprep.subr.mxu0 0.0
    %945 = vmatpush2.msra.mxu0 0.0
    %946 = vmatprep.subr.mxu0 0.0
    %947 = vmatpush2.msra.mxu0 0.0
    %948 = vmatprep.subr.mxu0 0.0
    %949 = vmatpush2.msra.mxu0 0.0
    %950 = vmatprep.subr.mxu0 0.0
    %951 = vmatpush2.msra.mxu0 0.0
    %952 = vmatprep.subr.mxu0 0.0
    %953 = vmatpush2.msra.mxu0 0.0
    %954 = vmatprep.subr.mxu0 0.0
    %955 = vmatpush2.msra.mxu0 0.0
    %956 = vmatprep.subr.mxu0 0.0
    %957 = vmatpush2.msra.mxu0 0.0
    %958 = vmatprep.subr.mxu0 0.0
    %959 = vmatpush2.msra.mxu0 0.0
    %960 = vmatprep.subr.mxu0 0.0
    %961 = vmatpush2.msra.mxu0 0.0
    %962 = vmatprep.subr.mxu0 0.0
    %963 = vmatpush2.msra.mxu0 0.0
    %964 = vmatprep.subr.mxu0 0.0
    %965 = vmatpush2.msra.mxu0 0.0
    %966 = vmatprep.subr.mxu0 0.0
    %967 = vmatpush2.msra.mxu0 0.0
    %968 = vmatprep.subr.mxu0 0.0
    %969 = vmatpush2.msra.mxu0 0.0
    %970 = vmatprep.subr.mxu0 0.0
    %971 = vmatpush2.msra.mxu0 0.0
    %972 = vmatprep.mubr.f32.mxu0 0.0
    %973 = vmatmul.mubr.f32.gmra.mxu0 %v893
    %v974 = vpop.f32.mrf.mxu0
    %v975 = vadd.f32 0.0, %v974
    %v976 = vpop.f32.mrf.mxu0
    %977 = vmatprep.mubr.f32.mxu0 0.0
    %978 = vmatmul.mubr.f32.gmra.mxu0 %v896
    %v979 = vpop.f32.mrf.mxu0
    %v980 = vadd.f32 0.0, %v979
    %v981 = vpop.f32.mrf.mxu0
    %982 = vmatprep.mubr.f32.mxu0 0.0
    %983 = vmatmul.mubr.f32.gmra.mxu0 %v899
    %v984 = vpop.f32.mrf.mxu0
    %v985 = vadd.f32 0.0, %v984
    %v986 = vpop.f32.mrf.mxu0
    %987 = vmatprep.mubr.f32.mxu0 0.0
    %988 = vmatmul.mubr.f32.gmra.mxu0 %v902
    %v989 = vpop.f32.mrf.mxu0
    %v990 = vadd.f32 0.0, %v989
    %v991 = vpop.f32.mrf.mxu0
    %992 = vdwg.mxu0
    %v993 = vmul.f32 %v795, %v975
    %v994 = vmul.f32 %v797, %v980
    %v995 = vmul.f32 %v799, %v985
    %v996 = vmul.f32 %v801, %v990
    %997 = vmatprep.subr.mxu0 0.0
    %998 = vmatpush1.xpose.msra.mxu0 0.0
    %999 = vmatprep.subr.mxu0 0.0
    %1000 = vmatpush1.xpose.msra.mxu0 0.0
    %1001 = vmatprep.subr.mxu0 0.0
    %1002 = vmatpush1.xpose.msra.mxu0 0.0
    %1003 = vmatprep.subr.mxu0 0.0
    %1004 = vmatpush1.xpose.msra.mxu0 0.0
    %1005 = vmatprep.subr.mxu0 0.0
    %1006 = vmatpush1.xpose.msra.mxu0 0.0
    %1007 = vmatprep.subr.mxu0 0.0
    %1008 = vmatpush1.xpose.msra.mxu0 0.0
    %1009 = vmatprep.subr.mxu0 0.0
    %1010 = vmatpush1.xpose.msra.mxu0 0.0
    %1011 = vmatprep.subr.mxu0 0.0
    %1012 = vmatpush1.xpose.msra.mxu0 0.0
    %1013 = vmatprep.subr.mxu0 0.0
    %1014 = vmatpush1.xpose.msra.mxu0 0.0
    %1015 = vmatprep.subr.mxu0 0.0
    %1016 = vmatpush1.xpose.msra.mxu0 0.0
    %1017 = vmatprep.subr.mxu0 0.0
    %1018 = vmatpush1.xpose.msra.mxu0 0.0
    %1019 = vmatprep.subr.mxu0 0.0
    %1020 = vmatpush1.xpose.msra.mxu0 0.0
    %1021 = vmatprep.subr.mxu0 0.0
    %1022 = vmatpush1.xpose.msra.mxu0 %v601
    %1023 = vmatprep.subr.mxu0 0.0
    %1024 = vmatpush1.xpose.msra.mxu0 %v600
    %1025 = vmatprep.subr.mxu0 0.0
    %1026 = vmatpush1.xpose.msra.mxu0 %v599
    %1027 = vmatprep.subr.mxu0 0.0
    %1028 = vmatpush1.xpose.msra.mxu0 %v598
    %1029 = vmatprep.subr.mxu0 0.0
    %1030 = vmatpush2.xpose.msra.mxu0 0.0
    %1031 = vmatprep.subr.mxu0 0.0
    %1032 = vmatpush2.xpose.msra.mxu0 0.0
    %1033 = vmatprep.subr.mxu0 0.0
    %1034 = vmatpush2.xpose.msra.mxu0 0.0
    %1035 = vmatprep.subr.mxu0 0.0
    %1036 = vmatpush2.xpose.msra.mxu0 0.0
    %1037 = vmatprep.subr.mxu0 0.0
    %1038 = vmatpush2.xpose.msra.mxu0 0.0
    %1039 = vmatprep.subr.mxu0 0.0
    %1040 = vmatpush2.xpose.msra.mxu0 0.0
    %1041 = vmatprep.subr.mxu0 0.0
    %1042 = vmatpush2.xpose.msra.mxu0 0.0
    %1043 = vmatprep.subr.mxu0 0.0
    %1044 = vmatpush2.xpose.msra.mxu0 0.0
    %1045 = vmatprep.subr.mxu0 0.0
    %1046 = vmatpush2.xpose.msra.mxu0 0.0
    %1047 = vmatprep.subr.mxu0 0.0
    %1048 = vmatpush2.xpose.msra.mxu0 0.0
    %1049 = vmatprep.subr.mxu0 0.0
    %1050 = vmatpush2.xpose.msra.mxu0 0.0
    %1051 = vmatprep.subr.mxu0 0.0
    %1052 = vmatpush2.xpose.msra.mxu0 0.0
    %1053 = vmatprep.subr.mxu0 0.0
    %1054 = vmatpush2.xpose.msra.mxu0 0.0
    %1055 = vmatprep.subr.mxu0 0.0
    %1056 = vmatpush2.xpose.msra.mxu0 0.0
    %1057 = vmatprep.subr.mxu0 0.0
    %1058 = vmatpush2.xpose.msra.mxu0 0.0
    %1059 = vmatprep.subr.mxu0 0.0
    %1060 = vmatpush2.xpose.msra.mxu0 0.0
    %1061 = vmatprep.mubr.f32.mxu0 0.0
    %1062 = vmatmul.mubr.f32.gmra.mxu0 %v993
    %v1063 = vpop.f32.mrf.mxu0
    %v1064 = vadd.f32 0.0, %v1063
    %v1065 = vpop.f32.mrf.mxu0
    %1066 = vmatprep.mubr.f32.mxu0 0.0
    %1067 = vmatmul.mubr.f32.gmra.mxu0 %v994
    %v1068 = vpop.f32.mrf.mxu0
    %v1069 = vadd.f32 0.0, %v1068
    %v1070 = vpop.f32.mrf.mxu0
    %1071 = vmatprep.mubr.f32.mxu0 0.0
    %1072 = vmatmul.mubr.f32.gmra.mxu0 %v995
    %v1073 = vpop.f32.mrf.mxu0
    %v1074 = vadd.f32 0.0, %v1073
    %v1075 = vpop.f32.mrf.mxu0
    %1076 = vmatprep.mubr.f32.mxu0 0.0
    %1077 = vmatmul.mubr.f32.gmra.mxu0 %v996
    %v1078 = vpop.f32.mrf.mxu0
    %v1079 = vadd.f32 0.0, %v1078
    %v1080 = vpop.f32.mrf.mxu0
    %1081 = vdwg.mxu0
    %v1082 = vlaneseq
    %v1083 = vshrl.u32 %v1082, 7
    %v1084 = vsub.s32 3, %v1083
    %v1085 = vrot.slane %v118, %v1084
    %v1087 = vsel %vm137, %v1064, 0
    %v1090 = vsel %vm137, %v1069, 0
    %v1093 = vsel %vm137, %v1074, 0
    %v1096 = vsel %vm137, %v1079, 0
    %1098 = vmatprep.subr.mxu0 0.0
    %1099 = vmatpush1.msra.mxu0 0.0
    %1100 = vmatprep.subr.mxu0 0.0
    %1101 = vmatpush1.msra.mxu0 0.0
    %1102 = vmatprep.subr.mxu0 0.0
    %1103 = vmatpush1.msra.mxu0 0.0
    %1104 = vmatprep.subr.mxu0 0.0
    %1105 = vmatpush1.msra.mxu0 0.0
    %1106 = vmatprep.subr.mxu0 0.0
    %1107 = vmatpush1.msra.mxu0 0.0
    %1108 = vmatprep.subr.mxu0 0.0
    %1109 = vmatpush1.msra.mxu0 0.0
    %1110 = vmatprep.subr.mxu0 0.0
    %1111 = vmatpush1.msra.mxu0 0.0
    %1112 = vmatprep.subr.mxu0 0.0
    %1113 = vmatpush1.msra.mxu0 0.0
    %1114 = vmatprep.subr.mxu0 0.0
    %1115 = vmatpush1.msra.mxu0 0.0
    %1116 = vmatprep.subr.mxu0 0.0
    %1117 = vmatpush1.msra.mxu0 0.0
    %1118 = vmatprep.subr.mxu0 0.0
    %1119 = vmatpush1.msra.mxu0 0.0
    %1120 = vmatprep.subr.mxu0 0.0
    %1121 = vmatpush1.msra.mxu0 0.0
    %1122 = vmatprep.subr.mxu0 0.0
    %1123 = vmatpush1.msra.mxu0 %v105
    %1124 = vmatprep.subr.mxu0 0.0
    %1125 = vmatpush1.msra.mxu0 %v99
    %1126 = vmatprep.subr.mxu0 0.0
    %1127 = vmatpush1.msra.mxu0 %v93
    %1128 = vmatprep.subr.mxu0 0.0
    %1129 = vmatpush1.msra.mxu0 %v87
    %1130 = vmatprep.subr.mxu0 0.0
    %1131 = vmatpush2.msra.mxu0 0.0
    %1132 = vmatprep.subr.mxu0 0.0
    %1133 = vmatpush2.msra.mxu0 0.0
    %1134 = vmatprep.subr.mxu0 0.0
    %1135 = vmatpush2.msra.mxu0 0.0
    %1136 = vmatprep.subr.mxu0 0.0
    %1137 = vmatpush2.msra.mxu0 0.0
    %1138 = vmatprep.subr.mxu0 0.0
    %1139 = vmatpush2.msra.mxu0 0.0
    %1140 = vmatprep.subr.mxu0 0.0
    %1141 = vmatpush2.msra.mxu0 0.0
    %1142 = vmatprep.subr.mxu0 0.0
    %1143 = vmatpush2.msra.mxu0 0.0
    %1144 = vmatprep.subr.mxu0 0.0
    %1145 = vmatpush2.msra.mxu0 0.0
    %1146 = vmatprep.subr.mxu0 0.0
    %1147 = vmatpush2.msra.mxu0 0.0
    %1148 = vmatprep.subr.mxu0 0.0
    %1149 = vmatpush2.msra.mxu0 0.0
    %1150 = vmatprep.subr.mxu0 0.0
    %1151 = vmatpush2.msra.mxu0 0.0
    %1152 = vmatprep.subr.mxu0 0.0
    %1153 = vmatpush2.msra.mxu0 0.0
    %1154 = vmatprep.subr.mxu0 0.0
    %1155 = vmatpush2.msra.mxu0 0.0
    %1156 = vmatprep.subr.mxu0 0.0
    %1157 = vmatpush2.msra.mxu0 0.0
    %1158 = vmatprep.subr.mxu0 0.0
    %1159 = vmatpush2.msra.mxu0 0.0
    %1160 = vmatprep.subr.mxu0 0.0
    %1161 = vmatpush2.msra.mxu0 0.0
    %1162 = vmatprep.mubr.f32.mxu0 0.0
    %1163 = vmatmul.mubr.f32.gmra.mxu0 %v1087
    %v1164 = vpop.f32.mrf.mxu0
    %v1165 = vadd.f32 %v1085, %v1164
    %v1166 = vpop.f32.mrf.mxu0
    %1167 = vmatprep.mubr.f32.mxu0 0.0
    %1168 = vmatmul.mubr.f32.gmra.mxu0 %v1090
    %v1169 = vpop.f32.mrf.mxu0
    %v1170 = vadd.f32 %v1085, %v1169
    %v1171 = vpop.f32.mrf.mxu0
    %1172 = vmatprep.mubr.f32.mxu0 0.0
    %1173 = vmatmul.mubr.f32.gmra.mxu0 %v1093
    %v1174 = vpop.f32.mrf.mxu0
    %v1175 = vadd.f32 %v1085, %v1174
    %v1176 = vpop.f32.mrf.mxu0
    %1177 = vmatprep.mubr.f32.mxu0 0.0
    %1178 = vmatmul.mubr.f32.gmra.mxu0 %v1096
    %v1179 = vpop.f32.mrf.mxu0
    %v1180 = vadd.f32 %v1085, %v1179
    %v1181 = vpop.f32.mrf.mxu0
    %1182 = vdwg.mxu0
    %v1183 = vadd.f32 %v78, %v1165
    %v1184 = vadd.f32 %v79, %v1170
    %v1185 = vadd.f32 %v80, %v1175
    %v1186 = vadd.f32 %v81, %v1180
    %v1187 = vsel %vm137, %v1183, 0.0
    %1188 = vadd.xlane.f32.xlu0 %v1187
    %v1189 = vpop.xlane.xlu0 %1188
    %v1190 = vsel %vm137, %v1184, 0.0
    %1191 = vadd.xlane.f32.xlu0 %v1190
    %v1192 = vpop.xlane.xlu0 %1191
    %v1193 = vsel %vm137, %v1185, 0.0
    %1194 = vadd.xlane.f32.xlu0 %v1193
    %v1195 = vpop.xlane.xlu0 %1194
    %v1196 = vsel %vm137, %v1186, 0.0
    %1197 = vadd.xlane.f32.xlu0 %v1196
    %v1198 = vpop.xlane.xlu0 %1197
    %v1199 = vmul.f32 %v1189, %v150
    %v1200 = vmul.f32 %v1192, %v150
    %v1201 = vmul.f32 %v1195, %v150
    %v1202 = vmul.f32 %v1198, %v150
    %v1203 = vsub.f32 %v1183, %v1199
    %v1204 = vsub.f32 %v1184, %v1200
    %v1205 = vsub.f32 %v1185, %v1201
    %v1206 = vsub.f32 %v1186, %v1202
    %v1207 = vmul.f32 %v1203, %v1203
    %v1208 = vmul.f32 %v1204, %v1204
    %v1209 = vmul.f32 %v1205, %v1205
    %v1210 = vmul.f32 %v1206, %v1206
    %v1211 = vsel %vm137, %v1207, 0.0
    %1212 = vadd.xlane.f32.xlu0 %v1211
    %v1213 = vpop.xlane.xlu0 %1212
    %v1214 = vsel %vm137, %v1208, 0.0
    %1215 = vadd.xlane.f32.xlu0 %v1214
    %v1216 = vpop.xlane.xlu0 %1215
    %v1217 = vsel %vm137, %v1209, 0.0
    %1218 = vadd.xlane.f32.xlu0 %v1217
    %v1219 = vpop.xlane.xlu0 %1218
    %v1220 = vsel %vm137, %v1210, 0.0
    %1221 = vadd.xlane.f32.xlu0 %v1220
    %v1222 = vpop.xlane.xlu0 %1221
    %v1223 = vmul.f32 %v1213, %v150
    %v1224 = vmul.f32 %v1216, %v150
    %v1225 = vmul.f32 %v1219, %v150
    %v1226 = vmul.f32 %v1222, %v150
    %v1227 = vadd.f32 %v1223, 1e-05
    %v1228 = vadd.f32 %v1224, 1e-05
    %v1229 = vadd.f32 %v1225, 1e-05
    %v1230 = vadd.f32 %v1226, 1e-05
    %v1231 = vrsqrt.pop %v1227
    %v1232 = vrsqrt.pop %v1228
    %v1233 = vrsqrt.pop %v1229
    %v1234 = vrsqrt.pop %v1230
    %v1235 = vmul.f32 %v1203, %v1231
    %v1236 = vmul.f32 %v1204, %v1232
    %v1237 = vmul.f32 %v1205, %v1233
    %v1238 = vmul.f32 %v1206, %v1234
    %v1239 = vlaneseq
    %v1240 = vshrl.u32 %v1239, 7
    %v1241 = vsub.s32 4, %v1240
    %v1242 = vrot.slane %v118, %v1241
    %v1243 = vmul.f32 %v1235, %v1242
    %v1244 = vmul.f32 %v1236, %v1242
    %v1245 = vmul.f32 %v1237, %v1242
    %v1246 = vmul.f32 %v1238, %v1242
    %v1247 = vlaneseq
    %v1248 = vshrl.u32 %v1247, 7
    %v1249 = vsub.s32 5, %v1248
    %v1250 = vrot.slane %v118, %v1249
    %v1251 = vadd.f32 %v1243, %v1250
    %v1252 = vadd.f32 %v1244, %v1250
    %v1253 = vadd.f32 %v1245, %v1250
    %v1254 = vadd.f32 %v1246, %v1250
    %v1255 = vlaneseq
    %v1256 = vshrl.u32 %v1255, 7
    %v1257 = vsub.s32 6, %v1256
    %v1258 = vrot.slane %v118, %v1257
    %v1260 = vsel %vm137, %v1251, 0
    %v1263 = vsel %vm137, %v1252, 0
    %v1266 = vsel %vm137, %v1253, 0
    %v1269 = vsel %vm137, %v1254, 0
    %1271 = vmatprep.subr.mxu0 0.0
    %1272 = vmatpush1.msra.mxu0 0.0
    %1273 = vmatprep.subr.mxu0 0.0
    %1274 = vmatpush1.msra.mxu0 0.0
    %1275 = vmatprep.subr.mxu0 0.0
    %1276 = vmatpush1.msra.mxu0 0.0
    %1277 = vmatprep.subr.mxu0 0.0
    %1278 = vmatpush1.msra.mxu0 0.0
    %1279 = vmatprep.subr.mxu0 0.0
    %1280 = vmatpush1.msra.mxu0 0.0
    %1281 = vmatprep.subr.mxu0 0.0
    %1282 = vmatpush1.msra.mxu0 0.0
    %1283 = vmatprep.subr.mxu0 0.0
    %1284 = vmatpush1.msra.mxu0 0.0
    %1285 = vmatprep.subr.mxu0 0.0
    %1286 = vmatpush1.msra.mxu0 0.0
    %1287 = vmatprep.subr.mxu0 0.0
    %1288 = vmatpush1.msra.mxu0 0.0
    %1289 = vmatprep.subr.mxu0 0.0
    %1290 = vmatpush1.msra.mxu0 0.0
    %1291 = vmatprep.subr.mxu0 0.0
    %1292 = vmatpush1.msra.mxu0 0.0
    %1293 = vmatprep.subr.mxu0 0.0
    %1294 = vmatpush1.msra.mxu0 0.0
    %1295 = vmatprep.subr.mxu0 0.0
    %1296 = vmatpush1.msra.mxu0 %v106
    %1297 = vmatprep.subr.mxu0 0.0
    %1298 = vmatpush1.msra.mxu0 %v100
    %1299 = vmatprep.subr.mxu0 0.0
    %1300 = vmatpush1.msra.mxu0 %v94
    %1301 = vmatprep.subr.mxu0 0.0
    %1302 = vmatpush1.msra.mxu0 %v88
    %1303 = vmatprep.subr.mxu0 0.0
    %1304 = vmatpush2.msra.mxu0 0.0
    %1305 = vmatprep.subr.mxu0 0.0
    %1306 = vmatpush2.msra.mxu0 0.0
    %1307 = vmatprep.subr.mxu0 0.0
    %1308 = vmatpush2.msra.mxu0 0.0
    %1309 = vmatprep.subr.mxu0 0.0
    %1310 = vmatpush2.msra.mxu0 0.0
    %1311 = vmatprep.subr.mxu0 0.0
    %1312 = vmatpush2.msra.mxu0 0.0
    %1313 = vmatprep.subr.mxu0 0.0
    %1314 = vmatpush2.msra.mxu0 0.0
    %1315 = vmatprep.subr.mxu0 0.0
    %1316 = vmatpush2.msra.mxu0 0.0
    %1317 = vmatprep.subr.mxu0 0.0
    %1318 = vmatpush2.msra.mxu0 0.0
    %1319 = vmatprep.subr.mxu0 0.0
    %1320 = vmatpush2.msra.mxu0 0.0
    %1321 = vmatprep.subr.mxu0 0.0
    %1322 = vmatpush2.msra.mxu0 0.0
    %1323 = vmatprep.subr.mxu0 0.0
    %1324 = vmatpush2.msra.mxu0 0.0
    %1325 = vmatprep.subr.mxu0 0.0
    %1326 = vmatpush2.msra.mxu0 0.0
    %1327 = vmatprep.subr.mxu0 0.0
    %1328 = vmatpush2.msra.mxu0 0.0
    %1329 = vmatprep.subr.mxu0 0.0
    %1330 = vmatpush2.msra.mxu0 0.0
    %1331 = vmatprep.subr.mxu0 0.0
    %1332 = vmatpush2.msra.mxu0 0.0
    %1333 = vmatprep.subr.mxu0 0.0
    %1334 = vmatpush2.msra.mxu0 0.0
    %1335 = vmatprep.mubr.f32.mxu0 0.0
    %1336 = vmatmul.mubr.f32.gmra.mxu0 %v1260
    %v1337 = vpop.f32.mrf.mxu0
    %v1338 = vadd.f32 %v1258, %v1337
    %v1339 = vpop.f32.mrf.mxu0
    %1340 = vmatprep.mubr.f32.mxu0 0.0
    %1341 = vmatmul.mubr.f32.gmra.mxu0 %v1263
    %v1342 = vpop.f32.mrf.mxu0
    %v1343 = vadd.f32 %v1258, %v1342
    %v1344 = vpop.f32.mrf.mxu0
    %1345 = vmatprep.mubr.f32.mxu0 0.0
    %1346 = vmatmul.mubr.f32.gmra.mxu0 %v1266
    %v1347 = vpop.f32.mrf.mxu0
    %v1348 = vadd.f32 %v1258, %v1347
    %v1349 = vpop.f32.mrf.mxu0
    %1350 = vmatprep.mubr.f32.mxu0 0.0
    %1351 = vmatmul.mubr.f32.gmra.mxu0 %v1269
    %v1352 = vpop.f32.mrf.mxu0
    %v1353 = vadd.f32 %v1258, %v1352
    %v1354 = vpop.f32.mrf.mxu0
    %1355 = vdwg.mxu0
    %v1356 = vlaneseq
    %v1357 = vshrl.u32 %v1356, 7
    %v1358 = vsub.s32 7, %v1357
    %v1359 = vrot.slane %v118, %v1358
    %v1361 = vsel %vm137, %v82, 0
    %v1364 = vsel %vm137, %v83, 0
    %v1367 = vsel %vm137, %v84, 0
    %v1370 = vsel %vm137, %v85, 0
    %1372 = vmatprep.subr.mxu0 0.0
    %1373 = vmatpush1.msra.mxu0 0.0
    %1374 = vmatprep.subr.mxu0 0.0
    %1375 = vmatpush1.msra.mxu0 0.0
    %1376 = vmatprep.subr.mxu0 0.0
    %1377 = vmatpush1.msra.mxu0 0.0
    %1378 = vmatprep.subr.mxu0 0.0
    %1379 = vmatpush1.msra.mxu0 0.0
    %1380 = vmatprep.subr.mxu0 0.0
    %1381 = vmatpush1.msra.mxu0 0.0
    %1382 = vmatprep.subr.mxu0 0.0
    %1383 = vmatpush1.msra.mxu0 0.0
    %1384 = vmatprep.subr.mxu0 0.0
    %1385 = vmatpush1.msra.mxu0 0.0
    %1386 = vmatprep.subr.mxu0 0.0
    %1387 = vmatpush1.msra.mxu0 0.0
    %1388 = vmatprep.subr.mxu0 0.0
    %1389 = vmatpush1.msra.mxu0 0.0
    %1390 = vmatprep.subr.mxu0 0.0
    %1391 = vmatpush1.msra.mxu0 0.0
    %1392 = vmatprep.subr.mxu0 0.0
    %1393 = vmatpush1.msra.mxu0 0.0
    %1394 = vmatprep.subr.mxu0 0.0
    %1395 = vmatpush1.msra.mxu0 0.0
    %1396 = vmatprep.subr.mxu0 0.0
    %1397 = vmatpush1.msra.mxu0 %v107
    %1398 = vmatprep.subr.mxu0 0.0
    %1399 = vmatpush1.msra.mxu0 %v101
    %1400 = vmatprep.subr.mxu0 0.0
    %1401 = vmatpush1.msra.mxu0 %v95
    %1402 = vmatprep.subr.mxu0 0.0
    %1403 = vmatpush1.msra.mxu0 %v89
    %1404 = vmatprep.subr.mxu0 0.0
    %1405 = vmatpush2.msra.mxu0 0.0
    %1406 = vmatprep.subr.mxu0 0.0
    %1407 = vmatpush2.msra.mxu0 0.0
    %1408 = vmatprep.subr.mxu0 0.0
    %1409 = vmatpush2.msra.mxu0 0.0
    %1410 = vmatprep.subr.mxu0 0.0
    %1411 = vmatpush2.msra.mxu0 0.0
    %1412 = vmatprep.subr.mxu0 0.0
    %1413 = vmatpush2.msra.mxu0 0.0
    %1414 = vmatprep.subr.mxu0 0.0
    %1415 = vmatpush2.msra.mxu0 0.0
    %1416 = vmatprep.subr.mxu0 0.0
    %1417 = vmatpush2.msra.mxu0 0.0
    %1418 = vmatprep.subr.mxu0 0.0
    %1419 = vmatpush2.msra.mxu0 0.0
    %1420 = vmatprep.subr.mxu0 0.0
    %1421 = vmatpush2.msra.mxu0 0.0
    %1422 = vmatprep.subr.mxu0 0.0
    %1423 = vmatpush2.msra.mxu0 0.0
    %1424 = vmatprep.subr.mxu0 0.0
    %1425 = vmatpush2.msra.mxu0 0.0
    %1426 = vmatprep.subr.mxu0 0.0
    %1427 = vmatpush2.msra.mxu0 0.0
    %1428 = vmatprep.subr.mxu0 0.0
    %1429 = vmatpush2.msra.mxu0 0.0
    %1430 = vmatprep.subr.mxu0 0.0
    %1431 = vmatpush2.msra.mxu0 0.0
    %1432 = vmatprep.subr.mxu0 0.0
    %1433 = vmatpush2.msra.mxu0 0.0
    %1434 = vmatprep.subr.mxu0 0.0
    %1435 = vmatpush2.msra.mxu0 0.0
    %1436 = vmatprep.mubr.f32.mxu0 0.0
    %1437 = vmatmul.mubr.f32.gmra.mxu0 %v1361
    %v1438 = vpop.f32.mrf.mxu0
    %v1439 = vadd.f32 %v1359, %v1438
    %v1440 = vpop.f32.mrf.mxu0
    %1441 = vmatprep.mubr.f32.mxu0 0.0
    %1442 = vmatmul.mubr.f32.gmra.mxu0 %v1364
    %v1443 = vpop.f32.mrf.mxu0
    %v1444 = vadd.f32 %v1359, %v1443
    %v1445 = vpop.f32.mrf.mxu0
    %1446 = vmatprep.mubr.f32.mxu0 0.0
    %1447 = vmatmul.mubr.f32.gmra.mxu0 %v1367
    %v1448 = vpop.f32.mrf.mxu0
    %v1449 = vadd.f32 %v1359, %v1448
    %v1450 = vpop.f32.mrf.mxu0
    %1451 = vmatprep.mubr.f32.mxu0 0.0
    %1452 = vmatmul.mubr.f32.gmra.mxu0 %v1370
    %v1453 = vpop.f32.mrf.mxu0
    %v1454 = vadd.f32 %v1359, %v1453
    %v1455 = vpop.f32.mrf.mxu0
    %1456 = vdwg.mxu0
    %1457 = vxpose.xlu0.b32.start [1/16] %v1439, 128
    %1458 = vxpose.xlu0.b32.cont [2/16] %v1444, 128
    %1459 = vxpose.xlu0.b32.cont [3/16] %v1449, 128
    %1460 = vxpose.xlu0.b32.cont [4/16] %v1454, 128
    %1461 = vxpose.xlu0.b32.cont [5/16] 0.0, 128
    %1462 = vxpose.xlu0.b32.cont [6/16] 0.0, 128
    %1463 = vxpose.xlu0.b32.cont [7/16] 0.0, 128
    %1464 = vxpose.xlu0.b32.cont [8/16] 0.0, 128
    %1465 = vxpose.xlu0.b32.cont [9/16] 0.0, 128
    %1466 = vxpose.xlu0.b32.cont [10/16] 0.0, 128
    %1467 = vxpose.xlu0.b32.cont [11/16] 0.0, 128
    %1468 = vxpose.xlu0.b32.cont [12/16] 0.0, 128
    %1469 = vxpose.xlu0.b32.cont [13/16] 0.0, 128
    %1470 = vxpose.xlu0.b32.cont [14/16] 0.0, 128
    %1471 = vxpose.xlu0.b32.cont [15/16] 0.0, 128
    %1472 = vxpose.xlu0.b32.end [16/16] 0.0, 128
    %v1473 = vpop.trf.xlu0
    %v1474 = vpop.trf.xlu0
    %v1475 = vpop.trf.xlu0
    %v1476 = vpop.trf.xlu0
    %v1477 = vpop.trf.xlu0
    %v1478 = vpop.trf.xlu0
    %v1479 = vpop.trf.xlu0
    %v1480 = vpop.trf.xlu0
    %v1481 = vpop.trf.xlu0
    %v1482 = vpop.trf.xlu0
    %v1483 = vpop.trf.xlu0
    %v1484 = vpop.trf.xlu0
    %v1485 = vpop.trf.xlu0
    %v1486 = vpop.trf.xlu0
    %v1487 = vpop.trf.xlu0
    %v1488 = vpop.trf.xlu0
    %v1490 = vsel %vm137, %v1473, 0
    %v1493 = vsel %vm137, %v1474, 0
    %v1496 = vsel %vm137, %v1475, 0
    %v1499 = vsel %vm137, %v1476, 0
    %1501 = vmatprep.subr.mxu0 0.0
    %1502 = vmatpush1.msra.mxu0 0.0
    %1503 = vmatprep.subr.mxu0 0.0
    %1504 = vmatpush1.msra.mxu0 0.0
    %1505 = vmatprep.subr.mxu0 0.0
    %1506 = vmatpush1.msra.mxu0 0.0
    %1507 = vmatprep.subr.mxu0 0.0
    %1508 = vmatpush1.msra.mxu0 0.0
    %1509 = vmatprep.subr.mxu0 0.0
    %1510 = vmatpush1.msra.mxu0 0.0
    %1511 = vmatprep.subr.mxu0 0.0
    %1512 = vmatpush1.msra.mxu0 0.0
    %1513 = vmatprep.subr.mxu0 0.0
    %1514 = vmatpush1.msra.mxu0 0.0
    %1515 = vmatprep.subr.mxu0 0.0
    %1516 = vmatpush1.msra.mxu0 0.0
    %1517 = vmatprep.subr.mxu0 0.0
    %1518 = vmatpush1.msra.mxu0 0.0
    %1519 = vmatprep.subr.mxu0 0.0
    %1520 = vmatpush1.msra.mxu0 0.0
    %1521 = vmatprep.subr.mxu0 0.0
    %1522 = vmatpush1.msra.mxu0 0.0
    %1523 = vmatprep.subr.mxu0 0.0
    %1524 = vmatpush1.msra.mxu0 0.0
    %1525 = vmatprep.subr.mxu0 0.0
    %1526 = vmatpush1.msra.mxu0 %v131
    %1527 = vmatprep.subr.mxu0 0.0
    %1528 = vmatpush1.msra.mxu0 %v130
    %1529 = vmatprep.subr.mxu0 0.0
    %1530 = vmatpush1.msra.mxu0 %v129
    %1531 = vmatprep.subr.mxu0 0.0
    %1532 = vmatpush1.msra.mxu0 %v128
    %1533 = vmatprep.subr.mxu0 0.0
    %1534 = vmatpush2.msra.mxu0 0.0
    %1535 = vmatprep.subr.mxu0 0.0
    %1536 = vmatpush2.msra.mxu0 0.0
    %1537 = vmatprep.subr.mxu0 0.0
    %1538 = vmatpush2.msra.mxu0 0.0
    %1539 = vmatprep.subr.mxu0 0.0
    %1540 = vmatpush2.msra.mxu0 0.0
    %1541 = vmatprep.subr.mxu0 0.0
    %1542 = vmatpush2.msra.mxu0 0.0
    %1543 = vmatprep.subr.mxu0 0.0
    %1544 = vmatpush2.msra.mxu0 0.0
    %1545 = vmatprep.subr.mxu0 0.0
    %1546 = vmatpush2.msra.mxu0 0.0
    %1547 = vmatprep.subr.mxu0 0.0
    %1548 = vmatpush2.msra.mxu0 0.0
    %1549 = vmatprep.subr.mxu0 0.0
    %1550 = vmatpush2.msra.mxu0 0.0
    %1551 = vmatprep.subr.mxu0 0.0
    %1552 = vmatpush2.msra.mxu0 0.0
    %1553 = vmatprep.subr.mxu0 0.0
    %1554 = vmatpush2.msra.mxu0 0.0
    %1555 = vmatprep.subr.mxu0 0.0
    %1556 = vmatpush2.msra.mxu0 0.0
    %1557 = vmatprep.subr.mxu0 0.0
    %1558 = vmatpush2.msra.mxu0 0.0
    %1559 = vmatprep.subr.mxu0 0.0
    %1560 = vmatpush2.msra.mxu0 0.0
    %1561 = vmatprep.subr.mxu0 0.0
    %1562 = vmatpush2.msra.mxu0 0.0
    %1563 = vmatprep.subr.mxu0 0.0
    %1564 = vmatpush2.msra.mxu0 0.0
    %1565 = vmatprep.mubr.f32.mxu0 0.0
    %1566 = vmatmul.mubr.f32.gmra.mxu0 %v1490
    %v1567 = vpop.f32.mrf.mxu0
    %v1568 = vadd.f32 0.0, %v1567
    %v1569 = vpop.f32.mrf.mxu0
    %1570 = vmatprep.mubr.f32.mxu0 0.0
    %1571 = vmatmul.mubr.f32.gmra.mxu0 %v1493
    %v1572 = vpop.f32.mrf.mxu0
    %v1573 = vadd.f32 0.0, %v1572
    %v1574 = vpop.f32.mrf.mxu0
    %1575 = vmatprep.mubr.f32.mxu0 0.0
    %1576 = vmatmul.mubr.f32.gmra.mxu0 %v1496
    %v1577 = vpop.f32.mrf.mxu0
    %v1578 = vadd.f32 0.0, %v1577
    %v1579 = vpop.f32.mrf.mxu0
    %1580 = vmatprep.mubr.f32.mxu0 0.0
    %1581 = vmatmul.mubr.f32.gmra.mxu0 %v1499
    %v1582 = vpop.f32.mrf.mxu0
    %v1583 = vadd.f32 0.0, %v1582
    %v1584 = vpop.f32.mrf.mxu0
    %1585 = vdwg.mxu0
    %v1586 = vmul.f32 %v1568, %v132
    %v1587 = vmul.f32 %v1573, %v133
    %v1588 = vmul.f32 %v1578, %v134
    %v1589 = vmul.f32 %v1583, %v135
    %1594 = vrot.lane.b32.xlu0 %v1439, 96
    %v1595 = vpop.permute.xlu0 %1594
    %1596 = vrot.lane.b32.xlu0 %v1444, 96
    %v1597 = vpop.permute.xlu0 %1596
    %1598 = vrot.lane.b32.xlu0 %v1449, 96
    %v1599 = vpop.permute.xlu0 %1598
    %1600 = vrot.lane.b32.xlu0 %v1454, 96
    %v1601 = vpop.permute.xlu0 %1600
    %1606 = vxpose.xlu0.b32.start [1/16] %v1595, 128
    %1607 = vxpose.xlu0.b32.cont [2/16] %v1597, 128
    %1608 = vxpose.xlu0.b32.cont [3/16] %v1599, 128
    %1609 = vxpose.xlu0.b32.cont [4/16] %v1601, 128
    %1610 = vxpose.xlu0.b32.cont [5/16] 0.0, 128
    %1611 = vxpose.xlu0.b32.cont [6/16] 0.0, 128
    %1612 = vxpose.xlu0.b32.cont [7/16] 0.0, 128
    %1613 = vxpose.xlu0.b32.cont [8/16] 0.0, 128
    %1614 = vxpose.xlu0.b32.cont [9/16] 0.0, 128
    %1615 = vxpose.xlu0.b32.cont [10/16] 0.0, 128
    %1616 = vxpose.xlu0.b32.cont [11/16] 0.0, 128
    %1617 = vxpose.xlu0.b32.cont [12/16] 0.0, 128
    %1618 = vxpose.xlu0.b32.cont [13/16] 0.0, 128
    %1619 = vxpose.xlu0.b32.cont [14/16] 0.0, 128
    %1620 = vxpose.xlu0.b32.cont [15/16] 0.0, 128
    %1621 = vxpose.xlu0.b32.end [16/16] 0.0, 128
    %v1622 = vpop.trf.xlu0
    %v1623 = vpop.trf.xlu0
    %v1624 = vpop.trf.xlu0
    %v1625 = vpop.trf.xlu0
    %v1626 = vpop.trf.xlu0
    %v1627 = vpop.trf.xlu0
    %v1628 = vpop.trf.xlu0
    %v1629 = vpop.trf.xlu0
    %v1630 = vpop.trf.xlu0
    %v1631 = vpop.trf.xlu0
    %v1632 = vpop.trf.xlu0
    %v1633 = vpop.trf.xlu0
    %v1634 = vpop.trf.xlu0
    %v1635 = vpop.trf.xlu0
    %v1636 = vpop.trf.xlu0
    %v1637 = vpop.trf.xlu0
    %v1639 = vsel %vm137, %v1622, 0
    %v1642 = vsel %vm137, %v1623, 0
    %v1645 = vsel %vm137, %v1624, 0
    %v1648 = vsel %vm137, %v1625, 0
    %1650 = vmatprep.subr.mxu0 0.0
    %1651 = vmatpush1.msra.mxu0 0.0
    %1652 = vmatprep.subr.mxu0 0.0
    %1653 = vmatpush1.msra.mxu0 0.0
    %1654 = vmatprep.subr.mxu0 0.0
    %1655 = vmatpush1.msra.mxu0 0.0
    %1656 = vmatprep.subr.mxu0 0.0
    %1657 = vmatpush1.msra.mxu0 0.0
    %1658 = vmatprep.subr.mxu0 0.0
    %1659 = vmatpush1.msra.mxu0 0.0
    %1660 = vmatprep.subr.mxu0 0.0
    %1661 = vmatpush1.msra.mxu0 0.0
    %1662 = vmatprep.subr.mxu0 0.0
    %1663 = vmatpush1.msra.mxu0 0.0
    %1664 = vmatprep.subr.mxu0 0.0
    %1665 = vmatpush1.msra.mxu0 0.0
    %1666 = vmatprep.subr.mxu0 0.0
    %1667 = vmatpush1.msra.mxu0 0.0
    %1668 = vmatprep.subr.mxu0 0.0
    %1669 = vmatpush1.msra.mxu0 0.0
    %1670 = vmatprep.subr.mxu0 0.0
    %1671 = vmatpush1.msra.mxu0 0.0
    %1672 = vmatprep.subr.mxu0 0.0
    %1673 = vmatpush1.msra.mxu0 0.0
    %1674 = vmatprep.subr.mxu0 0.0
    %1675 = vmatpush1.msra.mxu0 %v131
    %1676 = vmatprep.subr.mxu0 0.0
    %1677 = vmatpush1.msra.mxu0 %v130
    %1678 = vmatprep.subr.mxu0 0.0
    %1679 = vmatpush1.msra.mxu0 %v129
    %1680 = vmatprep.subr.mxu0 0.0
    %1681 = vmatpush1.msra.mxu0 %v128
    %1682 = vmatprep.subr.mxu0 0.0
    %1683 = vmatpush2.msra.mxu0 0.0
    %1684 = vmatprep.subr.mxu0 0.0
    %1685 = vmatpush2.msra.mxu0 0.0
    %1686 = vmatprep.subr.mxu0 0.0
    %1687 = vmatpush2.msra.mxu0 0.0
    %1688 = vmatprep.subr.mxu0 0.0
    %1689 = vmatpush2.msra.mxu0 0.0
    %1690 = vmatprep.subr.mxu0 0.0
    %1691 = vmatpush2.msra.mxu0 0.0
    %1692 = vmatprep.subr.mxu0 0.0
    %1693 = vmatpush2.msra.mxu0 0.0
    %1694 = vmatprep.subr.mxu0 0.0
    %1695 = vmatpush2.msra.mxu0 0.0
    %1696 = vmatprep.subr.mxu0 0.0
    %1697 = vmatpush2.msra.mxu0 0.0
    %1698 = vmatprep.subr.mxu0 0.0
    %1699 = vmatpush2.msra.mxu0 0.0
    %1700 = vmatprep.subr.mxu0 0.0
    %1701 = vmatpush2.msra.mxu0 0.0
    %1702 = vmatprep.subr.mxu0 0.0
    %1703 = vmatpush2.msra.mxu0 0.0
    %1704 = vmatprep.subr.mxu0 0.0
    %1705 = vmatpush2.msra.mxu0 0.0
    %1706 = vmatprep.subr.mxu0 0.0
    %1707 = vmatpush2.msra.mxu0 0.0
    %1708 = vmatprep.subr.mxu0 0.0
    %1709 = vmatpush2.msra.mxu0 0.0
    %1710 = vmatprep.subr.mxu0 0.0
    %1711 = vmatpush2.msra.mxu0 0.0
    %1712 = vmatprep.subr.mxu0 0.0
    %1713 = vmatpush2.msra.mxu0 0.0
    %1714 = vmatprep.mubr.f32.mxu0 0.0
    %1715 = vmatmul.mubr.f32.gmra.mxu0 %v1639
    %v1716 = vpop.f32.mrf.mxu0
    %v1717 = vadd.f32 0.0, %v1716
    %v1718 = vpop.f32.mrf.mxu0
    %1719 = vmatprep.mubr.f32.mxu0 0.0
    %1720 = vmatmul.mubr.f32.gmra.mxu0 %v1642
    %v1721 = vpop.f32.mrf.mxu0
    %v1722 = vadd.f32 0.0, %v1721
    %v1723 = vpop.f32.mrf.mxu0
    %1724 = vmatprep.mubr.f32.mxu0 0.0
    %1725 = vmatmul.mubr.f32.gmra.mxu0 %v1645
    %v1726 = vpop.f32.mrf.mxu0
    %v1727 = vadd.f32 0.0, %v1726
    %v1728 = vpop.f32.mrf.mxu0
    %1729 = vmatprep.mubr.f32.mxu0 0.0
    %1730 = vmatmul.mubr.f32.gmra.mxu0 %v1648
    %v1731 = vpop.f32.mrf.mxu0
    %v1732 = vadd.f32 0.0, %v1731
    %v1733 = vpop.f32.mrf.mxu0
    %1734 = vdwg.mxu0
    %v1735 = vmul.f32 %v1717, %v132
    %v1736 = vmul.f32 %v1722, %v133
    %v1737 = vmul.f32 %v1727, %v134
    %v1738 = vmul.f32 %v1732, %v135
    %v1740 = vsel %vm137, %v1338, 0
    %v1743 = vsel %vm137, %v1343, 0
    %v1746 = vsel %vm137, %v1348, 0
    %v1749 = vsel %vm137, %v1353, 0
    %1751 = vmatprep.subr.mxu0 0.0
    %1752 = vmatpush1.msra.mxu0 0.0
    %1753 = vmatprep.subr.mxu0 0.0
    %1754 = vmatpush1.msra.mxu0 0.0
    %1755 = vmatprep.subr.mxu0 0.0
    %1756 = vmatpush1.msra.mxu0 0.0
    %1757 = vmatprep.subr.mxu0 0.0
    %1758 = vmatpush1.msra.mxu0 0.0
    %1759 = vmatprep.subr.mxu0 0.0
    %1760 = vmatpush1.msra.mxu0 0.0
    %1761 = vmatprep.subr.mxu0 0.0
    %1762 = vmatpush1.msra.mxu0 0.0
    %1763 = vmatprep.subr.mxu0 0.0
    %1764 = vmatpush1.msra.mxu0 0.0
    %1765 = vmatprep.subr.mxu0 0.0
    %1766 = vmatpush1.msra.mxu0 0.0
    %1767 = vmatprep.subr.mxu0 0.0
    %1768 = vmatpush1.msra.mxu0 0.0
    %1769 = vmatprep.subr.mxu0 0.0
    %1770 = vmatpush1.msra.mxu0 0.0
    %1771 = vmatprep.subr.mxu0 0.0
    %1772 = vmatpush1.msra.mxu0 0.0
    %1773 = vmatprep.subr.mxu0 0.0
    %1774 = vmatpush1.msra.mxu0 0.0
    %1775 = vmatprep.subr.mxu0 0.0
    %1776 = vmatpush1.msra.mxu0 %v1589
    %1777 = vmatprep.subr.mxu0 0.0
    %1778 = vmatpush1.msra.mxu0 %v1588
    %1779 = vmatprep.subr.mxu0 0.0
    %1780 = vmatpush1.msra.mxu0 %v1587
    %1781 = vmatprep.subr.mxu0 0.0
    %1782 = vmatpush1.msra.mxu0 %v1586
    %1783 = vmatprep.subr.mxu0 0.0
    %1784 = vmatpush2.msra.mxu0 0.0
    %1785 = vmatprep.subr.mxu0 0.0
    %1786 = vmatpush2.msra.mxu0 0.0
    %1787 = vmatprep.subr.mxu0 0.0
    %1788 = vmatpush2.msra.mxu0 0.0
    %1789 = vmatprep.subr.mxu0 0.0
    %1790 = vmatpush2.msra.mxu0 0.0
    %1791 = vmatprep.subr.mxu0 0.0
    %1792 = vmatpush2.msra.mxu0 0.0
    %1793 = vmatprep.subr.mxu0 0.0
    %1794 = vmatpush2.msra.mxu0 0.0
    %1795 = vmatprep.subr.mxu0 0.0
    %1796 = vmatpush2.msra.mxu0 0.0
    %1797 = vmatprep.subr.mxu0 0.0
    %1798 = vmatpush2.msra.mxu0 0.0
    %1799 = vmatprep.subr.mxu0 0.0
    %1800 = vmatpush2.msra.mxu0 0.0
    %1801 = vmatprep.subr.mxu0 0.0
    %1802 = vmatpush2.msra.mxu0 0.0
    %1803 = vmatprep.subr.mxu0 0.0
    %1804 = vmatpush2.msra.mxu0 0.0
    %1805 = vmatprep.subr.mxu0 0.0
    %1806 = vmatpush2.msra.mxu0 0.0
    %1807 = vmatprep.subr.mxu0 0.0
    %1808 = vmatpush2.msra.mxu0 0.0
    %1809 = vmatprep.subr.mxu0 0.0
    %1810 = vmatpush2.msra.mxu0 0.0
    %1811 = vmatprep.subr.mxu0 0.0
    %1812 = vmatpush2.msra.mxu0 0.0
    %1813 = vmatprep.subr.mxu0 0.0
    %1814 = vmatpush2.msra.mxu0 0.0
    %1815 = vmatprep.mubr.f32.mxu0 0.0
    %1816 = vmatmul.mubr.f32.gmra.mxu0 %v1740
    %v1817 = vpop.f32.mrf.mxu0
    %v1818 = vadd.f32 %v124, %v1817
    %v1819 = vpop.f32.mrf.mxu0
    %1820 = vmatprep.mubr.f32.mxu0 0.0
    %1821 = vmatmul.mubr.f32.gmra.mxu0 %v1743
    %v1822 = vpop.f32.mrf.mxu0
    %v1823 = vadd.f32 %v125, %v1822
    %v1824 = vpop.f32.mrf.mxu0
    %1825 = vmatprep.mubr.f32.mxu0 0.0
    %1826 = vmatmul.mubr.f32.gmra.mxu0 %v1746
    %v1827 = vpop.f32.mrf.mxu0
    %v1828 = vadd.f32 %v126, %v1827
    %v1829 = vpop.f32.mrf.mxu0
    %1830 = vmatprep.mubr.f32.mxu0 0.0
    %1831 = vmatmul.mubr.f32.gmra.mxu0 %v1749
    %v1832 = vpop.f32.mrf.mxu0
    %v1833 = vadd.f32 %v127, %v1832
    %v1834 = vpop.f32.mrf.mxu0
    %1835 = vdwg.mxu0
    %v1836 = vsel %vm137, %v1818, -inf
    %1837 = vmax.xlane.f32.xlu0 %v1836
    %v1838 = vpop.xlane.xlu0 %1837
    %v1839 = vsel %vm137, %v1823, -inf
    %1840 = vmax.xlane.f32.xlu0 %v1839
    %v1841 = vpop.xlane.xlu0 %1840
    %v1842 = vsel %vm137, %v1828, -inf
    %1843 = vmax.xlane.f32.xlu0 %v1842
    %v1844 = vpop.xlane.xlu0 %1843
    %v1845 = vsel %vm137, %v1833, -inf
    %1846 = vmax.xlane.f32.xlu0 %v1845
    %v1847 = vpop.xlane.xlu0 %1846
    %v1848 = vmul.f32 %v1838, %v710
    %v1849 = vmul.f32 %v1841, %v710
    %v1850 = vmul.f32 %v1844, %v710
    %v1851 = vmul.f32 %v1847, %v710
    %v1852 = vsel %vm715, %v1818, -inf
    %1853 = vmax.xlane.f32.xlu0 %v1852
    %v1854 = vpop.xlane.xlu0 %1853
    %v1855 = vsel %vm715, %v1823, -inf
    %1856 = vmax.xlane.f32.xlu0 %v1855
    %v1857 = vpop.xlane.xlu0 %1856
    %v1858 = vsel %vm715, %v1828, -inf
    %1859 = vmax.xlane.f32.xlu0 %v1858
    %v1860 = vpop.xlane.xlu0 %1859
    %v1861 = vsel %vm715, %v1833, -inf
    %1862 = vmax.xlane.f32.xlu0 %v1861
    %v1863 = vpop.xlane.xlu0 %1862
    %v1864 = vmul.f32 %v1854, %v731
    %v1865 = vmul.f32 %v1857, %v731
    %v1866 = vmul.f32 %v1860, %v731
    %v1867 = vmul.f32 %v1863, %v731
    %v1868 = vadd.f32 %v1848, %v1864
    %v1869 = vadd.f32 %v1849, %v1865
    %v1870 = vadd.f32 %v1850, %v1866
    %v1871 = vadd.f32 %v1851, %v1867
    %v1872 = vsel %vm740, %v1818, -inf
    %1873 = vmax.xlane.f32.xlu0 %v1872
    %v1874 = vpop.xlane.xlu0 %1873
    %v1875 = vsel %vm740, %v1823, -inf
    %1876 = vmax.xlane.f32.xlu0 %v1875
    %v1877 = vpop.xlane.xlu0 %1876
    %v1878 = vsel %vm740, %v1828, -inf
    %1879 = vmax.xlane.f32.xlu0 %v1878
    %v1880 = vpop.xlane.xlu0 %1879
    %v1881 = vsel %vm740, %v1833, -inf
    %1882 = vmax.xlane.f32.xlu0 %v1881
    %v1883 = vpop.xlane.xlu0 %1882
    %v1884 = vmul.f32 %v1874, %v756
    %v1885 = vmul.f32 %v1877, %v756
    %v1886 = vmul.f32 %v1880, %v756
    %v1887 = vmul.f32 %v1883, %v756
    %v1888 = vadd.f32 %v1868, %v1884
    %v1889 = vadd.f32 %v1869, %v1885
    %v1890 = vadd.f32 %v1870, %v1886
    %v1891 = vadd.f32 %v1871, %v1887
    %v1892 = vsel %vm765, %v1818, -inf
    %1893 = vmax.xlane.f32.xlu0 %v1892
    %v1894 = vpop.xlane.xlu0 %1893
    %v1895 = vsel %vm765, %v1823, -inf
    %1896 = vmax.xlane.f32.xlu0 %v1895
    %v1897 = vpop.xlane.xlu0 %1896
    %v1898 = vsel %vm765, %v1828, -inf
    %1899 = vmax.xlane.f32.xlu0 %v1898
    %v1900 = vpop.xlane.xlu0 %1899
    %v1901 = vsel %vm765, %v1833, -inf
    %1902 = vmax.xlane.f32.xlu0 %v1901
    %v1903 = vpop.xlane.xlu0 %1902
    %v1904 = vmul.f32 %v1894, %v781
    %v1905 = vmul.f32 %v1897, %v781
    %v1906 = vmul.f32 %v1900, %v781
    %v1907 = vmul.f32 %v1903, %v781
    %v1908 = vadd.f32 %v1888, %v1904
    %v1909 = vadd.f32 %v1889, %v1905
    %v1910 = vadd.f32 %v1890, %v1906
    %v1911 = vadd.f32 %v1891, %v1907
    %v1912 = vsub.f32 %v1818, %v1908
    %v1913 = vsub.f32 %v1823, %v1909
    %v1914 = vsub.f32 %v1828, %v1910
    %v1915 = vsub.f32 %v1833, %v1911
    %v1916 = vmul.f32 %v1912, 1.442695
    %v1917 = vpow.pop %v1916
    %v1918 = vmul.f32 %v1913, 1.442695
    %v1919 = vpow.pop %v1918
    %v1920 = vmul.f32 %v1914, 1.442695
    %v1921 = vpow.pop %v1920
    %v1922 = vmul.f32 %v1915, 1.442695
    %v1923 = vpow.pop %v1922
    %1924 = vmatprep.subr.mxu0 0.0
    %1925 = vmatpush1.xpose.msra.mxu0 0.0
    %1926 = vmatprep.subr.mxu0 0.0
    %1927 = vmatpush1.xpose.msra.mxu0 0.0
    %1928 = vmatprep.subr.mxu0 0.0
    %1929 = vmatpush1.xpose.msra.mxu0 0.0
    %1930 = vmatprep.subr.mxu0 0.0
    %1931 = vmatpush1.xpose.msra.mxu0 0.0
    %1932 = vmatprep.subr.mxu0 0.0
    %1933 = vmatpush1.xpose.msra.mxu0 0.0
    %1934 = vmatprep.subr.mxu0 0.0
    %1935 = vmatpush1.xpose.msra.mxu0 0.0
    %1936 = vmatprep.subr.mxu0 0.0
    %1937 = vmatpush1.xpose.msra.mxu0 0.0
    %1938 = vmatprep.subr.mxu0 0.0
    %1939 = vmatpush1.xpose.msra.mxu0 0.0
    %1940 = vmatprep.subr.mxu0 0.0
    %1941 = vmatpush1.xpose.msra.mxu0 0.0
    %1942 = vmatprep.subr.mxu0 0.0
    %1943 = vmatpush1.xpose.msra.mxu0 0.0
    %1944 = vmatprep.subr.mxu0 0.0
    %1945 = vmatpush1.xpose.msra.mxu0 0.0
    %1946 = vmatprep.subr.mxu0 0.0
    %1947 = vmatpush1.xpose.msra.mxu0 0.0
    %1948 = vmatprep.subr.mxu0 0.0
    %1949 = vmatpush1.xpose.msra.mxu0 0.0
    %1950 = vmatprep.subr.mxu0 0.0
    %1951 = vmatpush1.xpose.msra.mxu0 0.0
    %1952 = vmatprep.subr.mxu0 0.0
    %1953 = vmatpush1.xpose.msra.mxu0 0.0
    %1954 = vmatprep.subr.mxu0 0.0
    %1955 = vmatpush1.xpose.msra.mxu0 %v136
    %1956 = vmatprep.subr.mxu0 0.0
    %1957 = vmatpush2.xpose.msra.mxu0 0.0
    %1958 = vmatprep.subr.mxu0 0.0
    %1959 = vmatpush2.xpose.msra.mxu0 0.0
    %1960 = vmatprep.subr.mxu0 0.0
    %1961 = vmatpush2.xpose.msra.mxu0 0.0
    %1962 = vmatprep.subr.mxu0 0.0
    %1963 = vmatpush2.xpose.msra.mxu0 0.0
    %1964 = vmatprep.subr.mxu0 0.0
    %1965 = vmatpush2.xpose.msra.mxu0 0.0
    %1966 = vmatprep.subr.mxu0 0.0
    %1967 = vmatpush2.xpose.msra.mxu0 0.0
    %1968 = vmatprep.subr.mxu0 0.0
    %1969 = vmatpush2.xpose.msra.mxu0 0.0
    %1970 = vmatprep.subr.mxu0 0.0
    %1971 = vmatpush2.xpose.msra.mxu0 0.0
    %1972 = vmatprep.subr.mxu0 0.0
    %1973 = vmatpush2.xpose.msra.mxu0 0.0
    %1974 = vmatprep.subr.mxu0 0.0
    %1975 = vmatpush2.xpose.msra.mxu0 0.0
    %1976 = vmatprep.subr.mxu0 0.0
    %1977 = vmatpush2.xpose.msra.mxu0 0.0
    %1978 = vmatprep.subr.mxu0 0.0
    %1979 = vmatpush2.xpose.msra.mxu0 0.0
    %1980 = vmatprep.subr.mxu0 0.0
    %1981 = vmatpush2.xpose.msra.mxu0 0.0
    %1982 = vmatprep.subr.mxu0 0.0
    %1983 = vmatpush2.xpose.msra.mxu0 0.0
    %1984 = vmatprep.subr.mxu0 0.0
    %1985 = vmatpush2.xpose.msra.mxu0 0.0
    %1986 = vmatprep.subr.mxu0 0.0
    %1987 = vmatpush2.xpose.msra.mxu0 0.0
    %1988 = vmatprep.mubr.f32.mxu0 0.0
    %1989 = vmatmul.mubr.f32.gmra.mxu0 %v1917
    %v1990 = vpop.f32.mrf.mxu0
    %v1991 = vadd.f32 0.0, %v1990
    %v1992 = vpop.f32.mrf.mxu0
    %1993 = vmatprep.mubr.f32.mxu0 0.0
    %1994 = vmatmul.mubr.f32.gmra.mxu0 %v1919
    %v1995 = vpop.f32.mrf.mxu0
    %v1996 = vadd.f32 0.0, %v1995
    %v1997 = vpop.f32.mrf.mxu0
    %1998 = vmatprep.mubr.f32.mxu0 0.0
    %1999 = vmatmul.mubr.f32.gmra.mxu0 %v1921
    %v2000 = vpop.f32.mrf.mxu0
    %v2001 = vadd.f32 0.0, %v2000
    %v2002 = vpop.f32.mrf.mxu0
    %2003 = vmatprep.mubr.f32.mxu0 0.0
    %2004 = vmatmul.mubr.f32.gmra.mxu0 %v1923
    %v2005 = vpop.f32.mrf.mxu0
    %v2006 = vadd.f32 0.0, %v2005
    %v2007 = vpop.f32.mrf.mxu0
    %2008 = vdwg.mxu0
    %v2009 = vrcp.pop %v1991
    %v2010 = vrcp.pop %v1996
    %v2011 = vrcp.pop %v2001
    %v2012 = vrcp.pop %v2006
    %v2014 = vsel %vm891, %v2009, 0
    %v2017 = vsel %vm891, %v2010, 0
    %v2020 = vsel %vm891, %v2011, 0
    %v2023 = vsel %vm891, %v2012, 0
    %2025 = vmatprep.subr.mxu0 0.0
    %2026 = vmatpush1.msra.mxu0 0.0
    %2027 = vmatprep.subr.mxu0 0.0
    %2028 = vmatpush1.msra.mxu0 0.0
    %2029 = vmatprep.subr.mxu0 0.0
    %2030 = vmatpush1.msra.mxu0 0.0
    %2031 = vmatprep.subr.mxu0 0.0
    %2032 = vmatpush1.msra.mxu0 0.0
    %2033 = vmatprep.subr.mxu0 0.0
    %2034 = vmatpush1.msra.mxu0 0.0
    %2035 = vmatprep.subr.mxu0 0.0
    %2036 = vmatpush1.msra.mxu0 0.0
    %2037 = vmatprep.subr.mxu0 0.0
    %2038 = vmatpush1.msra.mxu0 0.0
    %2039 = vmatprep.subr.mxu0 0.0
    %2040 = vmatpush1.msra.mxu0 0.0
    %2041 = vmatprep.subr.mxu0 0.0
    %2042 = vmatpush1.msra.mxu0 0.0
    %2043 = vmatprep.subr.mxu0 0.0
    %2044 = vmatpush1.msra.mxu0 0.0
    %2045 = vmatprep.subr.mxu0 0.0
    %2046 = vmatpush1.msra.mxu0 0.0
    %2047 = vmatprep.subr.mxu0 0.0
    %2048 = vmatpush1.msra.mxu0 0.0
    %2049 = vmatprep.subr.mxu0 0.0
    %2050 = vmatpush1.msra.mxu0 0.0
    %2051 = vmatprep.subr.mxu0 0.0
    %2052 = vmatpush1.msra.mxu0 0.0
    %2053 = vmatprep.subr.mxu0 0.0
    %2054 = vmatpush1.msra.mxu0 0.0
    %2055 = vmatprep.subr.mxu0 0.0
    %2056 = vmatpush1.msra.mxu0 %v906
    %2057 = vmatprep.subr.mxu0 0.0
    %2058 = vmatpush2.msra.mxu0 0.0
    %2059 = vmatprep.subr.mxu0 0.0
    %2060 = vmatpush2.msra.mxu0 0.0
    %2061 = vmatprep.subr.mxu0 0.0
    %2062 = vmatpush2.msra.mxu0 0.0
    %2063 = vmatprep.subr.mxu0 0.0
    %2064 = vmatpush2.msra.mxu0 0.0
    %2065 = vmatprep.subr.mxu0 0.0
    %2066 = vmatpush2.msra.mxu0 0.0
    %2067 = vmatprep.subr.mxu0 0.0
    %2068 = vmatpush2.msra.mxu0 0.0
    %2069 = vmatprep.subr.mxu0 0.0
    %2070 = vmatpush2.msra.mxu0 0.0
    %2071 = vmatprep.subr.mxu0 0.0
    %2072 = vmatpush2.msra.mxu0 0.0
    %2073 = vmatprep.subr.mxu0 0.0
    %2074 = vmatpush2.msra.mxu0 0.0
    %2075 = vmatprep.subr.mxu0 0.0
    %2076 = vmatpush2.msra.mxu0 0.0
    %2077 = vmatprep.subr.mxu0 0.0
    %2078 = vmatpush2.msra.mxu0 0.0
    %2079 = vmatprep.subr.mxu0 0.0
    %2080 = vmatpush2.msra.mxu0 0.0
    %2081 = vmatprep.subr.mxu0 0.0
    %2082 = vmatpush2.msra.mxu0 0.0
    %2083 = vmatprep.subr.mxu0 0.0
    %2084 = vmatpush2.msra.mxu0 0.0
    %2085 = vmatprep.subr.mxu0 0.0
    %2086 = vmatpush2.msra.mxu0 0.0
    %2087 = vmatprep.subr.mxu0 0.0
    %2088 = vmatpush2.msra.mxu0 0.0
    %2089 = vmatprep.mubr.f32.mxu0 0.0
    %2090 = vmatmul.mubr.f32.gmra.mxu0 %v2014
    %v2091 = vpop.f32.mrf.mxu0
    %v2092 = vadd.f32 0.0, %v2091
    %v2093 = vpop.f32.mrf.mxu0
    %2094 = vmatprep.mubr.f32.mxu0 0.0
    %2095 = vmatmul.mubr.f32.gmra.mxu0 %v2017
    %v2096 = vpop.f32.mrf.mxu0
    %v2097 = vadd.f32 0.0, %v2096
    %v2098 = vpop.f32.mrf.mxu0
    %2099 = vmatprep.mubr.f32.mxu0 0.0
    %2100 = vmatmul.mubr.f32.gmra.mxu0 %v2020
    %v2101 = vpop.f32.mrf.mxu0
    %v2102 = vadd.f32 0.0, %v2101
    %v2103 = vpop.f32.mrf.mxu0
    %2104 = vmatprep.mubr.f32.mxu0 0.0
    %2105 = vmatmul.mubr.f32.gmra.mxu0 %v2023
    %v2106 = vpop.f32.mrf.mxu0
    %v2107 = vadd.f32 0.0, %v2106
    %v2108 = vpop.f32.mrf.mxu0
    %2109 = vdwg.mxu0
    %v2110 = vmul.f32 %v1917, %v2092
    %v2111 = vmul.f32 %v1919, %v2097
    %v2112 = vmul.f32 %v1921, %v2102
    %v2113 = vmul.f32 %v1923, %v2107
    %2114 = vmatprep.subr.mxu0 0.0
    %2115 = vmatpush1.xpose.msra.mxu0 0.0
    %2116 = vmatprep.subr.mxu0 0.0
    %2117 = vmatpush1.xpose.msra.mxu0 0.0
    %2118 = vmatprep.subr.mxu0 0.0
    %2119 = vmatpush1.xpose.msra.mxu0 0.0
    %2120 = vmatprep.subr.mxu0 0.0
    %2121 = vmatpush1.xpose.msra.mxu0 0.0
    %2122 = vmatprep.subr.mxu0 0.0
    %2123 = vmatpush1.xpose.msra.mxu0 0.0
    %2124 = vmatprep.subr.mxu0 0.0
    %2125 = vmatpush1.xpose.msra.mxu0 0.0
    %2126 = vmatprep.subr.mxu0 0.0
    %2127 = vmatpush1.xpose.msra.mxu0 0.0
    %2128 = vmatprep.subr.mxu0 0.0
    %2129 = vmatpush1.xpose.msra.mxu0 0.0
    %2130 = vmatprep.subr.mxu0 0.0
    %2131 = vmatpush1.xpose.msra.mxu0 0.0
    %2132 = vmatprep.subr.mxu0 0.0
    %2133 = vmatpush1.xpose.msra.mxu0 0.0
    %2134 = vmatprep.subr.mxu0 0.0
    %2135 = vmatpush1.xpose.msra.mxu0 0.0
    %2136 = vmatprep.subr.mxu0 0.0
    %2137 = vmatpush1.xpose.msra.mxu0 0.0
    %2138 = vmatprep.subr.mxu0 0.0
    %2139 = vmatpush1.xpose.msra.mxu0 %v1738
    %2140 = vmatprep.subr.mxu0 0.0
    %2141 = vmatpush1.xpose.msra.mxu0 %v1737
    %2142 = vmatprep.subr.mxu0 0.0
    %2143 = vmatpush1.xpose.msra.mxu0 %v1736
    %2144 = vmatprep.subr.mxu0 0.0
    %2145 = vmatpush1.xpose.msra.mxu0 %v1735
    %2146 = vmatprep.subr.mxu0 0.0
    %2147 = vmatpush2.xpose.msra.mxu0 0.0
    %2148 = vmatprep.subr.mxu0 0.0
    %2149 = vmatpush2.xpose.msra.mxu0 0.0
    %2150 = vmatprep.subr.mxu0 0.0
    %2151 = vmatpush2.xpose.msra.mxu0 0.0
    %2152 = vmatprep.subr.mxu0 0.0
    %2153 = vmatpush2.xpose.msra.mxu0 0.0
    %2154 = vmatprep.subr.mxu0 0.0
    %2155 = vmatpush2.xpose.msra.mxu0 0.0
    %2156 = vmatprep.subr.mxu0 0.0
    %2157 = vmatpush2.xpose.msra.mxu0 0.0
    %2158 = vmatprep.subr.mxu0 0.0
    %2159 = vmatpush2.xpose.msra.mxu0 0.0
    %2160 = vmatprep.subr.mxu0 0.0
    %2161 = vmatpush2.xpose.msra.mxu0 0.0
    %2162 = vmatprep.subr.mxu0 0.0
    %2163 = vmatpush2.xpose.msra.mxu0 0.0
    %2164 = vmatprep.subr.mxu0 0.0
    %2165 = vmatpush2.xpose.msra.mxu0 0.0
    %2166 = vmatprep.subr.mxu0 0.0
    %2167 = vmatpush2.xpose.msra.mxu0 0.0
    %2168 = vmatprep.subr.mxu0 0.0
    %2169 = vmatpush2.xpose.msra.mxu0 0.0
    %2170 = vmatprep.subr.mxu0 0.0
    %2171 = vmatpush2.xpose.msra.mxu0 0.0
    %2172 = vmatprep.subr.mxu0 0.0
    %2173 = vmatpush2.xpose.msra.mxu0 0.0
    %2174 = vmatprep.subr.mxu0 0.0
    %2175 = vmatpush2.xpose.msra.mxu0 0.0
    %2176 = vmatprep.subr.mxu0 0.0
    %2177 = vmatpush2.xpose.msra.mxu0 0.0
    %2178 = vmatprep.mubr.f32.mxu0 0.0
    %2179 = vmatmul.mubr.f32.gmra.mxu0 %v2110
    %v2180 = vpop.f32.mrf.mxu0
    %v2181 = vadd.f32 0.0, %v2180
    %v2182 = vpop.f32.mrf.mxu0
    %2183 = vmatprep.mubr.f32.mxu0 0.0
    %2184 = vmatmul.mubr.f32.gmra.mxu0 %v2111
    %v2185 = vpop.f32.mrf.mxu0
    %v2186 = vadd.f32 0.0, %v2185
    %v2187 = vpop.f32.mrf.mxu0
    %2188 = vmatprep.mubr.f32.mxu0 0.0
    %2189 = vmatmul.mubr.f32.gmra.mxu0 %v2112
    %v2190 = vpop.f32.mrf.mxu0
    %v2191 = vadd.f32 0.0, %v2190
    %v2192 = vpop.f32.mrf.mxu0
    %2193 = vmatprep.mubr.f32.mxu0 0.0
    %2194 = vmatmul.mubr.f32.gmra.mxu0 %v2113
    %v2195 = vpop.f32.mrf.mxu0
    %v2196 = vadd.f32 0.0, %v2195
    %v2197 = vpop.f32.mrf.mxu0
    %2198 = vdwg.mxu0
    %v2199 = vlaneseq
    %v2200 = vshrl.u32 %v2199, 7
    %v2201 = vsub.s32 0, %v2200
    %v2202 = vrot.slane %v119, %v2201
    %v2204 = vsel %vm137, %v2181, 0
    %v2207 = vsel %vm137, %v2186, 0
    %v2210 = vsel %vm137, %v2191, 0
    %v2213 = vsel %vm137, %v2196, 0
    %2215 = vmatprep.subr.mxu0 0.0
    %2216 = vmatpush1.msra.mxu0 0.0
    %2217 = vmatprep.subr.mxu0 0.0
    %2218 = vmatpush1.msra.mxu0 0.0
    %2219 = vmatprep.subr.mxu0 0.0
    %2220 = vmatpush1.msra.mxu0 0.0
    %2221 = vmatprep.subr.mxu0 0.0
    %2222 = vmatpush1.msra.mxu0 0.0
    %2223 = vmatprep.subr.mxu0 0.0
    %2224 = vmatpush1.msra.mxu0 0.0
    %2225 = vmatprep.subr.mxu0 0.0
    %2226 = vmatpush1.msra.mxu0 0.0
    %2227 = vmatprep.subr.mxu0 0.0
    %2228 = vmatpush1.msra.mxu0 0.0
    %2229 = vmatprep.subr.mxu0 0.0
    %2230 = vmatpush1.msra.mxu0 0.0
    %2231 = vmatprep.subr.mxu0 0.0
    %2232 = vmatpush1.msra.mxu0 0.0
    %2233 = vmatprep.subr.mxu0 0.0
    %2234 = vmatpush1.msra.mxu0 0.0
    %2235 = vmatprep.subr.mxu0 0.0
    %2236 = vmatpush1.msra.mxu0 0.0
    %2237 = vmatprep.subr.mxu0 0.0
    %2238 = vmatpush1.msra.mxu0 0.0
    %2239 = vmatprep.subr.mxu0 0.0
    %2240 = vmatpush1.msra.mxu0 %v108
    %2241 = vmatprep.subr.mxu0 0.0
    %2242 = vmatpush1.msra.mxu0 %v102
    %2243 = vmatprep.subr.mxu0 0.0
    %2244 = vmatpush1.msra.mxu0 %v96
    %2245 = vmatprep.subr.mxu0 0.0
    %2246 = vmatpush1.msra.mxu0 %v90
    %2247 = vmatprep.subr.mxu0 0.0
    %2248 = vmatpush2.msra.mxu0 0.0
    %2249 = vmatprep.subr.mxu0 0.0
    %2250 = vmatpush2.msra.mxu0 0.0
    %2251 = vmatprep.subr.mxu0 0.0
    %2252 = vmatpush2.msra.mxu0 0.0
    %2253 = vmatprep.subr.mxu0 0.0
    %2254 = vmatpush2.msra.mxu0 0.0
    %2255 = vmatprep.subr.mxu0 0.0
    %2256 = vmatpush2.msra.mxu0 0.0
    %2257 = vmatprep.subr.mxu0 0.0
    %2258 = vmatpush2.msra.mxu0 0.0
    %2259 = vmatprep.subr.mxu0 0.0
    %2260 = vmatpush2.msra.mxu0 0.0
    %2261 = vmatprep.subr.mxu0 0.0
    %2262 = vmatpush2.msra.mxu0 0.0
    %2263 = vmatprep.subr.mxu0 0.0
    %2264 = vmatpush2.msra.mxu0 0.0
    %2265 = vmatprep.subr.mxu0 0.0
    %2266 = vmatpush2.msra.mxu0 0.0
    %2267 = vmatprep.subr.mxu0 0.0
    %2268 = vmatpush2.msra.mxu0 0.0
    %2269 = vmatprep.subr.mxu0 0.0
    %2270 = vmatpush2.msra.mxu0 0.0
    %2271 = vmatprep.subr.mxu0 0.0
    %2272 = vmatpush2.msra.mxu0 0.0
    %2273 = vmatprep.subr.mxu0 0.0
    %2274 = vmatpush2.msra.mxu0 0.0
    %2275 = vmatprep.subr.mxu0 0.0
    %2276 = vmatpush2.msra.mxu0 0.0
    %2277 = vmatprep.subr.mxu0 0.0
    %2278 = vmatpush2.msra.mxu0 0.0
    %2279 = vmatprep.mubr.f32.mxu0 0.0
    %2280 = vmatmul.mubr.f32.gmra.mxu0 %v2204
    %v2281 = vpop.f32.mrf.mxu0
    %v2282 = vadd.f32 %v2202, %v2281
    %v2283 = vpop.f32.mrf.mxu0
    %2284 = vmatprep.mubr.f32.mxu0 0.0
    %2285 = vmatmul.mubr.f32.gmra.mxu0 %v2207
    %v2286 = vpop.f32.mrf.mxu0
    %v2287 = vadd.f32 %v2202, %v2286
    %v2288 = vpop.f32.mrf.mxu0
    %2289 = vmatprep.mubr.f32.mxu0 0.0
    %2290 = vmatmul.mubr.f32.gmra.mxu0 %v2210
    %v2291 = vpop.f32.mrf.mxu0
    %v2292 = vadd.f32 %v2202, %v2291
    %v2293 = vpop.f32.mrf.mxu0
    %2294 = vmatprep.mubr.f32.mxu0 0.0
    %2295 = vmatmul.mubr.f32.gmra.mxu0 %v2213
    %v2296 = vpop.f32.mrf.mxu0
    %v2297 = vadd.f32 %v2202, %v2296
    %v2298 = vpop.f32.mrf.mxu0
    %2299 = vdwg.mxu0
    %v2300 = vadd.f32 %v1183, %v2282
    %v2301 = vadd.f32 %v1184, %v2287
    %v2302 = vadd.f32 %v1185, %v2292
    %v2303 = vadd.f32 %v1186, %v2297
    %v2304 = vsel %vm137, %v2300, 0.0
    %2305 = vadd.xlane.f32.xlu0 %v2304
    %v2306 = vpop.xlane.xlu0 %2305
    %v2307 = vsel %vm137, %v2301, 0.0
    %2308 = vadd.xlane.f32.xlu0 %v2307
    %v2309 = vpop.xlane.xlu0 %2308
    %v2310 = vsel %vm137, %v2302, 0.0
    %2311 = vadd.xlane.f32.xlu0 %v2310
    %v2312 = vpop.xlane.xlu0 %2311
    %v2313 = vsel %vm137, %v2303, 0.0
    %2314 = vadd.xlane.f32.xlu0 %v2313
    %v2315 = vpop.xlane.xlu0 %2314
    %v2316 = vmul.f32 %v2306, %v150
    %v2317 = vmul.f32 %v2309, %v150
    %v2318 = vmul.f32 %v2312, %v150
    %v2319 = vmul.f32 %v2315, %v150
    %v2320 = vsub.f32 %v2300, %v2316
    %v2321 = vsub.f32 %v2301, %v2317
    %v2322 = vsub.f32 %v2302, %v2318
    %v2323 = vsub.f32 %v2303, %v2319
    %v2324 = vmul.f32 %v2320, %v2320
    %v2325 = vmul.f32 %v2321, %v2321
    %v2326 = vmul.f32 %v2322, %v2322
    %v2327 = vmul.f32 %v2323, %v2323
    %v2328 = vsel %vm137, %v2324, 0.0
    %2329 = vadd.xlane.f32.xlu0 %v2328
    %v2330 = vpop.xlane.xlu0 %2329
    %v2331 = vsel %vm137, %v2325, 0.0
    %2332 = vadd.xlane.f32.xlu0 %v2331
    %v2333 = vpop.xlane.xlu0 %2332
    %v2334 = vsel %vm137, %v2326, 0.0
    %2335 = vadd.xlane.f32.xlu0 %v2334
    %v2336 = vpop.xlane.xlu0 %2335
    %v2337 = vsel %vm137, %v2327, 0.0
    %2338 = vadd.xlane.f32.xlu0 %v2337
    %v2339 = vpop.xlane.xlu0 %2338
    %v2340 = vmul.f32 %v2330, %v150
    %v2341 = vmul.f32 %v2333, %v150
    %v2342 = vmul.f32 %v2336, %v150
    %v2343 = vmul.f32 %v2339, %v150
    %v2344 = vadd.f32 %v2340, 1e-05
    %v2345 = vadd.f32 %v2341, 1e-05
    %v2346 = vadd.f32 %v2342, 1e-05
    %v2347 = vadd.f32 %v2343, 1e-05
    %v2348 = vrsqrt.pop %v2344
    %v2349 = vrsqrt.pop %v2345
    %v2350 = vrsqrt.pop %v2346
    %v2351 = vrsqrt.pop %v2347
    %v2352 = vmul.f32 %v2320, %v2348
    %v2353 = vmul.f32 %v2321, %v2349
    %v2354 = vmul.f32 %v2322, %v2350
    %v2355 = vmul.f32 %v2323, %v2351
    %v2356 = vlaneseq
    %v2357 = vshrl.u32 %v2356, 7
    %v2358 = vsub.s32 1, %v2357
    %v2359 = vrot.slane %v119, %v2358
    %v2360 = vmul.f32 %v2352, %v2359
    %v2361 = vmul.f32 %v2353, %v2359
    %v2362 = vmul.f32 %v2354, %v2359
    %v2363 = vmul.f32 %v2355, %v2359
    %v2364 = vlaneseq
    %v2365 = vshrl.u32 %v2364, 7
    %v2366 = vsub.s32 2, %v2365
    %v2367 = vrot.slane %v119, %v2366
    %v2368 = vadd.f32 %v2360, %v2367
    %v2369 = vadd.f32 %v2361, %v2367
    %v2370 = vadd.f32 %v2362, %v2367
    %v2371 = vadd.f32 %v2363, %v2367
    %v2372 = vlaneseq
    %v2373 = vshrl.u32 %v2372, 7
    %v2374 = vsub.s32 3, %v2373
    %v2375 = vrot.slane %v119, %v2374
    %v2377 = vsel %vm137, %v2368, 0
    %v2380 = vsel %vm137, %v2369, 0
    %v2383 = vsel %vm137, %v2370, 0
    %v2386 = vsel %vm137, %v2371, 0
    %2388 = vmatprep.subr.mxu0 0.0
    %2389 = vmatpush1.msra.mxu0 0.0
    %2390 = vmatprep.subr.mxu0 0.0
    %2391 = vmatpush1.msra.mxu0 0.0
    %2392 = vmatprep.subr.mxu0 0.0
    %2393 = vmatpush1.msra.mxu0 0.0
    %2394 = vmatprep.subr.mxu0 0.0
    %2395 = vmatpush1.msra.mxu0 0.0
    %2396 = vmatprep.subr.mxu0 0.0
    %2397 = vmatpush1.msra.mxu0 0.0
    %2398 = vmatprep.subr.mxu0 0.0
    %2399 = vmatpush1.msra.mxu0 0.0
    %2400 = vmatprep.subr.mxu0 0.0
    %2401 = vmatpush1.msra.mxu0 0.0
    %2402 = vmatprep.subr.mxu0 0.0
    %2403 = vmatpush1.msra.mxu0 0.0
    %2404 = vmatprep.subr.mxu0 0.0
    %2405 = vmatpush1.msra.mxu0 0.0
    %2406 = vmatprep.subr.mxu0 0.0
    %2407 = vmatpush1.msra.mxu0 0.0
    %2408 = vmatprep.subr.mxu0 0.0
    %2409 = vmatpush1.msra.mxu0 0.0
    %2410 = vmatprep.subr.mxu0 0.0
    %2411 = vmatpush1.msra.mxu0 0.0
    %2412 = vmatprep.subr.mxu0 0.0
    %2413 = vmatpush1.msra.mxu0 %v109
    %2414 = vmatprep.subr.mxu0 0.0
    %2415 = vmatpush1.msra.mxu0 %v103
    %2416 = vmatprep.subr.mxu0 0.0
    %2417 = vmatpush1.msra.mxu0 %v97
    %2418 = vmatprep.subr.mxu0 0.0
    %2419 = vmatpush1.msra.mxu0 %v91
    %2420 = vmatprep.subr.mxu0 0.0
    %2421 = vmatpush2.msra.mxu0 0.0
    %2422 = vmatprep.subr.mxu0 0.0
    %2423 = vmatpush2.msra.mxu0 0.0
    %2424 = vmatprep.subr.mxu0 0.0
    %2425 = vmatpush2.msra.mxu0 0.0
    %2426 = vmatprep.subr.mxu0 0.0
    %2427 = vmatpush2.msra.mxu0 0.0
    %2428 = vmatprep.subr.mxu0 0.0
    %2429 = vmatpush2.msra.mxu0 0.0
    %2430 = vmatprep.subr.mxu0 0.0
    %2431 = vmatpush2.msra.mxu0 0.0
    %2432 = vmatprep.subr.mxu0 0.0
    %2433 = vmatpush2.msra.mxu0 0.0
    %2434 = vmatprep.subr.mxu0 0.0
    %2435 = vmatpush2.msra.mxu0 0.0
    %2436 = vmatprep.subr.mxu0 0.0
    %2437 = vmatpush2.msra.mxu0 0.0
    %2438 = vmatprep.subr.mxu0 0.0
    %2439 = vmatpush2.msra.mxu0 0.0
    %2440 = vmatprep.subr.mxu0 0.0
    %2441 = vmatpush2.msra.mxu0 0.0
    %2442 = vmatprep.subr.mxu0 0.0
    %2443 = vmatpush2.msra.mxu0 0.0
    %2444 = vmatprep.subr.mxu0 0.0
    %2445 = vmatpush2.msra.mxu0 0.0
    %2446 = vmatprep.subr.mxu0 0.0
    %2447 = vmatpush2.msra.mxu0 0.0
    %2448 = vmatprep.subr.mxu0 0.0
    %2449 = vmatpush2.msra.mxu0 0.0
    %2450 = vmatprep.subr.mxu0 0.0
    %2451 = vmatpush2.msra.mxu0 0.0
    %2452 = vmatprep.mubr.f32.mxu0 0.0
    %2453 = vmatmul.mubr.f32.gmra.mxu0 %v2377
    %v2454 = vpop.f32.mrf.mxu0
    %v2455 = vadd.f32 %v2375, %v2454
    %v2456 = vpop.f32.mrf.mxu0
    %2457 = vmatprep.mubr.f32.mxu0 0.0
    %2458 = vmatmul.mubr.f32.gmra.mxu0 %v2380
    %v2459 = vpop.f32.mrf.mxu0
    %v2460 = vadd.f32 %v2375, %v2459
    %v2461 = vpop.f32.mrf.mxu0
    %2462 = vmatprep.mubr.f32.mxu0 0.0
    %2463 = vmatmul.mubr.f32.gmra.mxu0 %v2383
    %v2464 = vpop.f32.mrf.mxu0
    %v2465 = vadd.f32 %v2375, %v2464
    %v2466 = vpop.f32.mrf.mxu0
    %2467 = vmatprep.mubr.f32.mxu0 0.0
    %2468 = vmatmul.mubr.f32.gmra.mxu0 %v2386
    %v2469 = vpop.f32.mrf.mxu0
    %v2470 = vadd.f32 %v2375, %v2469
    %v2471 = vpop.f32.mrf.mxu0
    %2472 = vdwg.mxu0
    %v2473 = vmul.f32 %v2455, 0.5
    %v2474 = vmul.f32 %v2460, 0.5
    %v2475 = vmul.f32 %v2465, 0.5
    %v2476 = vmul.f32 %v2470, 0.5
    %v2477 = vmul.f32 %v2455, 0.70710677
    %v2478 = vmul.f32 %v2460, 0.70710677
    %v2479 = vmul.f32 %v2465, 0.70710677
    %v2480 = vmul.f32 %v2470, 0.70710677
    %v2481 = verf.f32.pop %v2477
    %v2482 = verf.f32.pop %v2478
    %v2483 = verf.f32.pop %v2479
    %v2484 = verf.f32.pop %v2480
    %v2485 = vadd.f32 %v2481, 1.0
    %v2486 = vadd.f32 %v2482, 1.0
    %v2487 = vadd.f32 %v2483, 1.0
    %v2488 = vadd.f32 %v2484, 1.0
    %v2489 = vmul.f32 %v2473, %v2485
    %v2490 = vmul.f32 %v2474, %v2486
    %v2491 = vmul.f32 %v2475, %v2487
    %v2492 = vmul.f32 %v2476, %v2488
    %vm2493 = vcmask 523264
    %v2495 = vsel %vm2493, %v2489, 0
    %v2498 = vsel %vm2493, %v2490, 0
    %v2501 = vsel %vm2493, %v2491, 0
    %v2504 = vsel %vm2493, %v2492, 0
    %2506 = vmatprep.subr.mxu0 0.0
    %2507 = vmatpush1.msra.mxu0 0.0
    %2508 = vmatprep.subr.mxu0 0.0
    %2509 = vmatpush1.msra.mxu0 0.0
    %2510 = vmatprep.subr.mxu0 0.0
    %2511 = vmatpush1.msra.mxu0 0.0
    %2512 = vmatprep.subr.mxu0 0.0
    %2513 = vmatpush1.msra.mxu0 0.0
    %2514 = vmatprep.subr.mxu0 0.0
    %2515 = vmatpush1.msra.mxu0 0.0
    %2516 = vmatprep.subr.mxu0 0.0
    %2517 = vmatpush1.msra.mxu0 0.0
    %2518 = vmatprep.subr.mxu0 0.0
    %2519 = vmatpush1.msra.mxu0 0.0
    %2520 = vmatprep.subr.mxu0 0.0
    %2521 = vmatpush1.msra.mxu0 0.0
    %2522 = vmatprep.subr.mxu0 0.0
    %2523 = vmatpush1.msra.mxu0 %v117
    %2524 = vmatprep.subr.mxu0 0.0
    %2525 = vmatpush1.msra.mxu0 %v116
    %2526 = vmatprep.subr.mxu0 0.0
    %2527 = vmatpush1.msra.mxu0 %v115
    %2528 = vmatprep.subr.mxu0 0.0
    %2529 = vmatpush1.msra.mxu0 %v114
    %2530 = vmatprep.subr.mxu0 0.0
    %2531 = vmatpush1.msra.mxu0 %v113
    %2532 = vmatprep.subr.mxu0 0.0
    %2533 = vmatpush1.msra.mxu0 %v112
    %2534 = vmatprep.subr.mxu0 0.0
    %2535 = vmatpush1.msra.mxu0 %v111
    %2536 = vmatprep.subr.mxu0 0.0
    %2537 = vmatpush1.msra.mxu0 %v110
    %2538 = vmatprep.subr.mxu0 0.0
    %2539 = vmatpush2.msra.mxu0 0.0
    %2540 = vmatprep.subr.mxu0 0.0
    %2541 = vmatpush2.msra.mxu0 0.0
    %2542 = vmatprep.subr.mxu0 0.0
    %2543 = vmatpush2.msra.mxu0 0.0
    %2544 = vmatprep.subr.mxu0 0.0
    %2545 = vmatpush2.msra.mxu0 0.0
    %2546 = vmatprep.subr.mxu0 0.0
    %2547 = vmatpush2.msra.mxu0 0.0
    %2548 = vmatprep.subr.mxu0 0.0
    %2549 = vmatpush2.msra.mxu0 0.0
    %2550 = vmatprep.subr.mxu0 0.0
    %2551 = vmatpush2.msra.mxu0 0.0
    %2552 = vmatprep.subr.mxu0 0.0
    %2553 = vmatpush2.msra.mxu0 0.0
    %2554 = vmatprep.subr.mxu0 0.0
    %2555 = vmatpush2.msra.mxu0 0.0
    %2556 = vmatprep.subr.mxu0 0.0
    %2557 = vmatpush2.msra.mxu0 0.0
    %2558 = vmatprep.subr.mxu0 0.0
    %2559 = vmatpush2.msra.mxu0 0.0
    %2560 = vmatprep.subr.mxu0 0.0
    %2561 = vmatpush2.msra.mxu0 0.0
    %2562 = vmatprep.subr.mxu0 0.0
    %2563 = vmatpush2.msra.mxu0 0.0
    %2564 = vmatprep.subr.mxu0 0.0
    %2565 = vmatpush2.msra.mxu0 0.0
    %2566 = vmatprep.subr.mxu0 0.0
    %2567 = vmatpush2.msra.mxu0 0.0
    %2568 = vmatprep.subr.mxu0 0.0
    %2569 = vmatpush2.msra.mxu0 0.0
    %2570 = vmatprep.mubr.f32.mxu0 0.0
    %2571 = vmatmul.mubr.f32.gmra.mxu0 %v2495
    %v2572 = vpop.f32.mrf.mxu0
    %v2573 = vadd.f32 0.0, %v2572
    %v2574 = vpop.f32.mrf.mxu0
    %2575 = vmatprep.mubr.f32.mxu0 0.0
    %2576 = vmatmul.mubr.f32.gmra.mxu0 %v2498
    %v2577 = vpop.f32.mrf.mxu0
    %v2578 = vadd.f32 0.0, %v2577
    %v2579 = vpop.f32.mrf.mxu0
    %2580 = vmatprep.mubr.f32.mxu0 0.0
    %2581 = vmatmul.mubr.f32.gmra.mxu0 %v2501
    %v2582 = vpop.f32.mrf.mxu0
    %v2583 = vadd.f32 0.0, %v2582
    %v2584 = vpop.f32.mrf.mxu0
    %2585 = vmatprep.mubr.f32.mxu0 0.0
    %2586 = vmatmul.mubr.f32.gmra.mxu0 %v2504
    %v2587 = vpop.f32.mrf.mxu0
    %v2588 = vadd.f32 0.0, %v2587
    %v2589 = vpop.f32.mrf.mxu0
    %2590 = vdwg.mxu0
    %v2591 = vadd.f32 %v2300, %v2573
    %v2592 = vadd.f32 %v2301, %v2578
    %v2593 = vadd.f32 %v2302, %v2583
    %v2594 = vadd.f32 %v2303, %v2588
    %v2595 = vlaneseq
    %v2596 = vshrl.u32 %v2595, 7
    %v2597 = vsub.s32 4, %v2596
    %v2598 = vrot.slane %v119, %v2597
    %v2599 = vadd.f32 %v2591, %v2598
    %v2600 = vadd.f32 %v2592, %v2598
    %v2601 = vadd.f32 %v2593, %v2598
    %v2602 = vadd.f32 %v2594, %v2598
    %2603 = vst.msk [vmem:[%s6] sm:$0xff] %vm137, %v2599
    %2604 = vst.msk [vmem:[%s6 + $0x8] sm:$0xff] %vm137, %v2600
    %2605 = vst.msk [vmem:[%s6 + $0x10] sm:$0xff] %vm137, %v2601
    %2606 = vst.msk [vmem:[%s6 + $0x18] sm:$0xff] %vm137, %v2602
    // Predicated region
    $region42: #{apply.1} parent=1 // pred_check
      _
    $region43: #{apply.1} parent=1 // pred_check_branch
      %2608 = sbr.rel (0) target = $region45
    $region44: #{apply.1} parent=1 // pred_region
      _
    $region45: #{apply.1} parent=1 // pred_fallthru
      _
    // Predicated region
    $region46: #{apply.1} parent=1 // pred_check
      _
    $region47: #{apply.1} parent=1 // pred_check_branch
      %2610 = sbr.rel (0) target = $region49
    $region48: #{apply.1} parent=1 // pred_region
      _
    $region49: #{apply.1} parent=1 // pred_fallthru
      _
    %2611 = vsyncpa [#allocation3], 1
    %2612 = vsyncpa [#allocation5], 1
    %2613 = vsyncpa [#allocation8], 1

</llo_original>
